<compile_context>
chip_gen: v7x
topology: tpu7x:2x2x1
jax: 0.10.0
libtpu: 0.0.40
codegen_flags: <defaults>
</compile_context>

<pallas_src>
import jax
import jax.numpy as jnp
from jax.experimental import pallas as pl
from jax.experimental.pallas import tpu as pltpu

Z_DIM = 2 ** 9          # 512
IMG_DIM = 1 * 28 * 28   # 784
IMG_PAD = 896           # 7 * 128 -> lane-dense padded output width
HIDDEN = [256, 512, 512, 256]
BN_EPS = 1e-5
TB_MAX = 512            # max batch tile (throughput regime)


def _round_up(n, m):
    return ((n + m - 1) // m) * m


def _choose_tb(batch):
    """Pick the batch-tile size (see header for rationale)."""
    b16 = _round_up(batch, 16)              # 16-row multiple (bf16 sublane packing)
    if b16 <= 16:
        return 16                           # single tiny tile
    if b16 >= 2 * TB_MAX:
        return TB_MAX                       # throughput: big tiles, many grid steps
    # medium batch: split into >=2 tiles so the "parallel" axis can shard across
    # v7x's two TensorCores, while keeping padding waste small.
    return min(TB_MAX, _round_up(b16 // 2, 16))


def generator_kernel(x_ref,
                     w1_ref, t1_ref, w2_ref, t2_ref,
                     w3_ref, t3_ref, w4_ref, t4_ref,
                     w5_ref, b5_ref,
                     out_ref):
    """Fused 5-layer MLP generator for one (TB, Z_DIM) bf16 batch tile."""

    def block(h_bf16, w_ref, t_ref):
        # bf16 operands on the MXU, f32 accumulation. BN eval-mode scale is folded
        # into the weight columns; linear bias + BN shift are folded into t (f32).
        y = jnp.dot(h_bf16, w_ref[...],
                    preferred_element_type=jnp.float32) + t_ref[...]
        # Dropout(0.2) == identity at inference; LeakyReLU(0.01) in f32 on the VPU,
        # then a single cast to bf16 for the next MXU dot.
        return jnp.where(y > 0, y, 0.01 * y).astype(jnp.bfloat16)

    h = x_ref[...]                          # already bf16 (cast once in the wrapper)
    h = block(h, w1_ref, t1_ref)
    h = block(h, w2_ref, t2_ref)
    h = block(h, w3_ref, t3_ref)
    h = block(h, w4_ref, t4_ref)
    y = jnp.dot(h, w5_ref[...], preferred_element_type=jnp.float32) + b5_ref[...]
    # tanh in f32 (EUP), store bf16 -> halves the dominant 896-wide HBM write.
    out_ref[...] = jnp.tanh(y).astype(jnp.bfloat16)


def init_params(key):
    """PyTorch-default-like init, with BN (eval) + bias folded into (W', t').

    Returns:
      kernel_params: bf16 folded weights (+ f32 shifts), final layer padded to 896.
      ref_params_f32: f32 folded weights/shifts, final layer unpadded, for an
        end-to-end f32 fidelity reference.
    """
    dims = [Z_DIM] + HIDDEN + [IMG_DIM]
    kparams, rparams = [], []
    for li in range(5):
        fan_in, fan_out = dims[li], dims[li + 1]
        key, kw, kb, kg, kbe, krm = jax.random.split(key, 6)
        bound = 1.0 / jnp.sqrt(fan_in)
        w = jax.random.uniform(kw, (fan_in, fan_out), jnp.float32, -bound, bound)
        b = jax.random.uniform(kb, (1, fan_out), jnp.float32, -bound, bound)
        if li < 4:
            gamma = 1.0 + 0.1 * jax.random.normal(kg, (1, fan_out), jnp.float32)
            beta = 0.1 * jax.random.normal(kbe, (1, fan_out), jnp.float32)
            run_mean = 0.1 * jax.random.normal(krm, (1, fan_out), jnp.float32)
            run_var = jnp.ones((1, fan_out), jnp.float32)
            scale = gamma / jnp.sqrt(run_var + BN_EPS)      # BN eval-mode scale
            shift = beta - run_mean * scale                 # BN eval-mode shift
            # (x @ W + b) * scale + shift == x @ (W * scale) + (b * scale + shift)
            w_f = w * scale
            t_f = b * scale + shift                         # keep f32
            kparams.append((w_f.astype(jnp.bfloat16), t_f))
            rparams.append((w_f, t_f))
        else:
            # Pad final layer to IMG_PAD lanes for unmasked vector stores.
            w_pad = jnp.zeros((fan_in, IMG_PAD), jnp.float32).at[:, :IMG_DIM].set(w)
            b_pad = jnp.zeros((1, IMG_PAD), jnp.float32).at[:, :IMG_DIM].set(b)
            kparams.append((w_pad.astype(jnp.bfloat16), b_pad))
            rparams.append((w, b))
    return kparams, rparams


@jax.jit
def generator_forward(x, params):
    B = x.shape[0]
    TB = _choose_tb(B)
    n_tiles = pl.cdiv(B, TB)
    B_pad = n_tiles * TB

    # bf16 latent: halves the per-tile input DMA; the MXU consumes bf16 anyway.
    x = x.astype(jnp.bfloat16)
    if B_pad != B:
        x = jnp.pad(x, ((0, B_pad - B), (0, 0)))

    flat_args = []
    for p in params:
        flat_args.extend(p)

    def resident(shape):
        # Constant block index -> DMA'd once, stays resident in VMEM across the grid.
        # Default double-buffering of the ~1.7 MB of weights only costs ~1.7 MB more,
        # far under the 32 MiB scoped limit, so we keep the default pipeline mode.
        return pl.BlockSpec(shape, lambda i: (0, 0))

    in_specs = [pl.BlockSpec((TB, Z_DIM), lambda i: (i, 0))]
    for w, t in params:
        in_specs.append(resident(w.shape))
        in_specs.append(resident(t.shape))

    out = pl.pallas_call(
        generator_kernel,
        out_shape=jax.ShapeDtypeStruct((B_pad, IMG_PAD), jnp.bfloat16),
        grid_spec=pltpu.PrefetchScalarGridSpec(
            num_scalar_prefetch=0,
            grid=(n_tiles,),
            in_specs=in_specs,
            out_specs=pl.BlockSpec((TB, IMG_PAD), lambda i: (i, 0)),
        ),
        compiler_params=pltpu.CompilerParams(
            dimension_semantics=("parallel",),
            vmem_limit_bytes=32 << 20,
        ),
    )(x, *flat_args)

    return out[:B, :IMG_DIM]


def generator_reference_matched(x, params):
    """Pure-JAX reference with the same numerics as the kernel (bf16 operands and
    weights, f32 accumulation, bf16 output) for tight kernel-vs-reference checks."""
    h = x.astype(jnp.bfloat16)
    for li in range(4):
        w, t = params[li]
        y = jnp.dot(h, w, preferred_element_type=jnp.float32) + t
        h = jnp.where(y > 0, y, 0.01 * y).astype(jnp.bfloat16)
    w, b = params[4]
    y = jnp.dot(h, w, preferred_element_type=jnp.float32) + b
    return jnp.tanh(y).astype(jnp.bfloat16)[:, :IMG_DIM]


def generator_reference_f32(x, ref_params):
    """End-to-end f32 reference of the eval-mode module, to bound the bf16
    folding / rounding error of the kernel path."""
    h = x
    for li in range(4):
        w, t = ref_params[li]
        y = jnp.dot(h, w) + t
        h = jnp.where(y > 0, y, 0.01 * y)
    w, b = ref_params[4]
    return jnp.tanh(jnp.dot(h, w) + b)


if __name__ == "__main__":
    key = jax.random.PRNGKey(0)
    key, kx = jax.random.split(key)

    B = 8
    x = jax.random.normal(kx, (B, Z_DIM), jnp.float32)
    kernel_params, ref_params_f32 = init_params(key)

    out = jax.block_until_ready(generator_forward(x, kernel_params))
    assert out.shape == (B, IMG_DIM)
    assert out.dtype == jnp.bfloat16
    out_f32 = out.astype(jnp.float32)

    # Tight check against a reference with identical numerics.
    ref_m = generator_reference_matched(x, kernel_params).astype(jnp.float32)
    assert jnp.allclose(out_f32, ref_m, atol=2e-2, rtol=2e-2), \
        "mismatch vs matched-numerics reference"

    # Loose fidelity check against an end-to-end f32 reference (bounds the error
    # introduced by folding BN into bf16 weights and bf16 activation rounding).
    ref_f = generator_reference_f32(x, ref_params_f32)
    assert float(jnp.max(jnp.abs(out_f32 - ref_f))) < 0.15, \
        "mismatch vs f32 end-to-end reference"

    print("KERNEL_OK")
</pallas_src>

<mosaic_0001>
module attributes {stable_mosaic.version = 11 : i64} {
  func.func @generator_kernel(%arg0: i32, %arg1: memref<16x512xbf16, #tpu.memory_space<vmem>>, %arg2: memref<512x256xbf16, #tpu.memory_space<vmem>>, %arg3: memref<1x256xf32, #tpu.memory_space<vmem>>, %arg4: memref<256x512xbf16, #tpu.memory_space<vmem>>, %arg5: memref<1x512xf32, #tpu.memory_space<vmem>>, %arg6: memref<512x512xbf16, #tpu.memory_space<vmem>>, %arg7: memref<1x512xf32, #tpu.memory_space<vmem>>, %arg8: memref<512x256xbf16, #tpu.memory_space<vmem>>, %arg9: memref<1x256xf32, #tpu.memory_space<vmem>>, %arg10: memref<256x896xbf16, #tpu.memory_space<vmem>>, %arg11: memref<1x896xf32, #tpu.memory_space<vmem>>, %arg12: memref<16x896xbf16, #tpu.memory_space<vmem>>) attributes {dimension_semantics = [#tpu.dimension_semantics<parallel>], iteration_bounds = array<i64: 1>, scalar_prefetch = 0 : i64, scratch_operands = 0 : i64, tpu.core_type = #tpu.core_type<tc>, window_params = [{transform_indices = @transform_0, window_bounds = array<i64: 16, 512>}, {pipeline_mode = #tpu.pipeline_mode<synchronous>, transform_indices = @transform_1, window_bounds = array<i64: 512, 256>}, {pipeline_mode = #tpu.pipeline_mode<synchronous>, transform_indices = @transform_2, window_bounds = array<i64: 1, 256>}, {pipeline_mode = #tpu.pipeline_mode<synchronous>, transform_indices = @transform_3, window_bounds = array<i64: 256, 512>}, {pipeline_mode = #tpu.pipeline_mode<synchronous>, transform_indices = @transform_4, window_bounds = array<i64: 1, 512>}, {pipeline_mode = #tpu.pipeline_mode<synchronous>, transform_indices = @transform_5, window_bounds = array<i64: 512, 512>}, {pipeline_mode = #tpu.pipeline_mode<synchronous>, transform_indices = @transform_6, window_bounds = array<i64: 1, 512>}, {pipeline_mode = #tpu.pipeline_mode<synchronous>, transform_indices = @transform_7, window_bounds = array<i64: 512, 256>}, {pipeline_mode = #tpu.pipeline_mode<synchronous>, transform_indices = @transform_8, window_bounds = array<i64: 1, 256>}, {pipeline_mode = #tpu.pipeline_mode<synchronous>, transform_indices = @transform_9, window_bounds = array<i64: 256, 896>}, {pipeline_mode = #tpu.pipeline_mode<synchronous>, transform_indices = @transform_10, window_bounds = array<i64: 1, 896>}, {transform_indices = @transform_11, window_bounds = array<i64: 16, 896>}]} {
    %c0 = arith.constant 0 : index
    %c0_0 = arith.constant 0 : index
    %0 = vector.load %arg1[%c0, %c0_0] : memref<16x512xbf16, #tpu.memory_space<vmem>>, vector<16x512xbf16>
    %c0_1 = arith.constant 0 : index
    %c0_2 = arith.constant 0 : index
    %1 = vector.load %arg2[%c0_1, %c0_2] : memref<512x256xbf16, #tpu.memory_space<vmem>>, vector<512x256xbf16>
    %cst = arith.constant dense<0.000000e+00> : vector<16x256xf32>
    %2 = tpu.matmul %0, %1, %cst {dimension_numbers = #tpu.dot_dimension_numbers<[1], [0], [0], [1], [0, 0, 1, 1], [], []>} : vector<16x512xbf16>, vector<512x256xbf16>, vector<16x256xf32> -> vector<16x256xf32>
    %c0_3 = arith.constant 0 : index
    %c0_4 = arith.constant 0 : index
    %3 = vector.load %arg3[%c0_3, %c0_4] : memref<1x256xf32, #tpu.memory_space<vmem>>, vector<1x256xf32>
    %4 = vector.broadcast %3 : vector<1x256xf32> to vector<16x256xf32>
    %5 = arith.addf %2, %4 : vector<16x256xf32>
    %cst_5 = arith.constant 0.000000e+00 : f32
    %6 = vector.broadcast %cst_5 : f32 to vector<16x256xf32>
    %7 = arith.cmpf ogt, %5, %6 : vector<16x256xf32>
    %cst_6 = arith.constant 0.00999999977 : f32
    %8 = vector.broadcast %cst_6 : f32 to vector<16x256xf32>
    %9 = arith.mulf %8, %5 : vector<16x256xf32>
    %10 = arith.select %7, %5, %9 : vector<16x256xi1>, vector<16x256xf32>
    %11 = arith.truncf %10 : vector<16x256xf32> to vector<16x256xbf16>
    %c0_7 = arith.constant 0 : index
    %c0_8 = arith.constant 0 : index
    %12 = vector.load %arg4[%c0_7, %c0_8] : memref<256x512xbf16, #tpu.memory_space<vmem>>, vector<256x512xbf16>
    %cst_9 = arith.constant dense<0.000000e+00> : vector<16x512xf32>
    %13 = tpu.matmul %11, %12, %cst_9 {dimension_numbers = #tpu.dot_dimension_numbers<[1], [0], [0], [1], [0, 0, 1, 1], [], []>} : vector<16x256xbf16>, vector<256x512xbf16>, vector<16x512xf32> -> vector<16x512xf32>
    %c0_10 = arith.constant 0 : index
    %c0_11 = arith.constant 0 : index
    %14 = vector.load %arg5[%c0_10, %c0_11] : memref<1x512xf32, #tpu.memory_space<vmem>>, vector<1x512xf32>
    %15 = vector.broadcast %14 : vector<1x512xf32> to vector<16x512xf32>
    %16 = arith.addf %13, %15 : vector<16x512xf32>
    %cst_12 = arith.constant 0.000000e+00 : f32
    %17 = vector.broadcast %cst_12 : f32 to vector<16x512xf32>
    %18 = arith.cmpf ogt, %16, %17 : vector<16x512xf32>
    %cst_13 = arith.constant 0.00999999977 : f32
    %19 = vector.broadcast %cst_13 : f32 to vector<16x512xf32>
    %20 = arith.mulf %19, %16 : vector<16x512xf32>
    %21 = arith.select %18, %16, %20 : vector<16x512xi1>, vector<16x512xf32>
    %22 = arith.truncf %21 : vector<16x512xf32> to vector<16x512xbf16>
    %c0_14 = arith.constant 0 : index
    %c0_15 = arith.constant 0 : index
    %23 = vector.load %arg6[%c0_14, %c0_15] : memref<512x512xbf16, #tpu.memory_space<vmem>>, vector<512x512xbf16>
    %cst_16 = arith.constant dense<0.000000e+00> : vector<16x512xf32>
    %24 = tpu.matmul %22, %23, %cst_16 {dimension_numbers = #tpu.dot_dimension_numbers<[1], [0], [0], [1], [0, 0, 1, 1], [], []>} : vector<16x512xbf16>, vector<512x512xbf16>, vector<16x512xf32> -> vector<16x512xf32>
    %c0_17 = arith.constant 0 : index
    %c0_18 = arith.constant 0 : index
    %25 = vector.load %arg7[%c0_17, %c0_18] : memref<1x512xf32, #tpu.memory_space<vmem>>, vector<1x512xf32>
    %26 = vector.broadcast %25 : vector<1x512xf32> to vector<16x512xf32>
    %27 = arith.addf %24, %26 : vector<16x512xf32>
    %cst_19 = arith.constant 0.000000e+00 : f32
    %28 = vector.broadcast %cst_19 : f32 to vector<16x512xf32>
    %29 = arith.cmpf ogt, %27, %28 : vector<16x512xf32>
    %cst_20 = arith.constant 0.00999999977 : f32
    %30 = vector.broadcast %cst_20 : f32 to vector<16x512xf32>
    %31 = arith.mulf %30, %27 : vector<16x512xf32>
    %32 = arith.select %29, %27, %31 : vector<16x512xi1>, vector<16x512xf32>
    %33 = arith.truncf %32 : vector<16x512xf32> to vector<16x512xbf16>
    %c0_21 = arith.constant 0 : index
    %c0_22 = arith.constant 0 : index
    %34 = vector.load %arg8[%c0_21, %c0_22] : memref<512x256xbf16, #tpu.memory_space<vmem>>, vector<512x256xbf16>
    %cst_23 = arith.constant dense<0.000000e+00> : vector<16x256xf32>
    %35 = tpu.matmul %33, %34, %cst_23 {dimension_numbers = #tpu.dot_dimension_numbers<[1], [0], [0], [1], [0, 0, 1, 1], [], []>} : vector<16x512xbf16>, vector<512x256xbf16>, vector<16x256xf32> -> vector<16x256xf32>
    %c0_24 = arith.constant 0 : index
    %c0_25 = arith.constant 0 : index
    %36 = vector.load %arg9[%c0_24, %c0_25] : memref<1x256xf32, #tpu.memory_space<vmem>>, vector<1x256xf32>
    %37 = vector.broadcast %36 : vector<1x256xf32> to vector<16x256xf32>
    %38 = arith.addf %35, %37 : vector<16x256xf32>
    %cst_26 = arith.constant 0.000000e+00 : f32
    %39 = vector.broadcast %cst_26 : f32 to vector<16x256xf32>
    %40 = arith.cmpf ogt, %38, %39 : vector<16x256xf32>
    %cst_27 = arith.constant 0.00999999977 : f32
    %41 = vector.broadcast %cst_27 : f32 to vector<16x256xf32>
    %42 = arith.mulf %41, %38 : vector<16x256xf32>
    %43 = arith.select %40, %38, %42 : vector<16x256xi1>, vector<16x256xf32>
    %44 = arith.truncf %43 : vector<16x256xf32> to vector<16x256xbf16>
    %c0_28 = arith.constant 0 : index
    %c0_29 = arith.constant 0 : index
    %45 = vector.load %arg10[%c0_28, %c0_29] : memref<256x896xbf16, #tpu.memory_space<vmem>>, vector<256x896xbf16>
    %cst_30 = arith.constant dense<0.000000e+00> : vector<16x896xf32>
    %46 = tpu.matmul %44, %45, %cst_30 {dimension_numbers = #tpu.dot_dimension_numbers<[1], [0], [0], [1], [0, 0, 1, 1], [], []>} : vector<16x256xbf16>, vector<256x896xbf16>, vector<16x896xf32> -> vector<16x896xf32>
    %c0_31 = arith.constant 0 : index
    %c0_32 = arith.constant 0 : index
    %47 = vector.load %arg11[%c0_31, %c0_32] : memref<1x896xf32, #tpu.memory_space<vmem>>, vector<1x896xf32>
    %48 = vector.broadcast %47 : vector<1x896xf32> to vector<16x896xf32>
    %49 = arith.addf %46, %48 : vector<16x896xf32>
    %50 = math.tanh %49 : vector<16x896xf32>
    %51 = arith.truncf %50 : vector<16x896xf32> to vector<16x896xbf16>
    %c0_33 = arith.constant 0 : index
    %c0_34 = arith.constant 0 : index
    %52 = vector.load %arg12[%c0_33, %c0_34] : memref<16x896xbf16, #tpu.memory_space<vmem>>, vector<16x896xbf16>
    tpu.vector_store %arg12[%c0_33, %c0_34], %51 {strides = array<i32>} : memref<16x896xbf16, #tpu.memory_space<vmem>>, vector<16x896xbf16>,
    return
  }
  func.func @transform_0(%arg0: i32) -> (i32, i32) {
    %c0_i32 = arith.constant 0 : i32
    %c0_i32_0 = arith.constant 0 : i32
    return %arg0, %c0_i32 : i32, i32
  }
  func.func @transform_1(%arg0: i32) -> (i32, i32) {
    %c0_i32 = arith.constant 0 : i32
    %c0_i32_0 = arith.constant 0 : i32
    %c0_i32_1 = arith.constant 0 : i32
    return %c0_i32, %c0_i32_0 : i32, i32
  }
  func.func @transform_2(%arg0: i32) -> (i32, i32) {
    %c0_i32 = arith.constant 0 : i32
    %c0_i32_0 = arith.constant 0 : i32
    %c0_i32_1 = arith.constant 0 : i32
    return %c0_i32, %c0_i32_0 : i32, i32
  }
  func.func @transform_3(%arg0: i32) -> (i32, i32) {
    %c0_i32 = arith.constant 0 : i32
    %c0_i32_0 = arith.constant 0 : i32
    %c0_i32_1 = arith.constant 0 : i32
    return %c0_i32, %c0_i32_0 : i32, i32
  }
  func.func @transform_4(%arg0: i32) -> (i32, i32) {
    %c0_i32 = arith.constant 0 : i32
    %c0_i32_0 = arith.constant 0 : i32
    %c0_i32_1 = arith.constant 0 : i32
    return %c0_i32, %c0_i32_0 : i32, i32
  }
  func.func @transform_5(%arg0: i32) -> (i32, i32) {
    %c0_i32 = arith.constant 0 : i32
    %c0_i32_0 = arith.constant 0 : i32
    %c0_i32_1 = arith.constant 0 : i32
    return %c0_i32, %c0_i32_0 : i32, i32
  }
  func.func @transform_6(%arg0: i32) -> (i32, i32) {
    %c0_i32 = arith.constant 0 : i32
    %c0_i32_0 = arith.constant 0 : i32
    %c0_i32_1 = arith.constant 0 : i32
    return %c0_i32, %c0_i32_0 : i32, i32
  }
  func.func @transform_7(%arg0: i32) -> (i32, i32) {
    %c0_i32 = arith.constant 0 : i32
    %c0_i32_0 = arith.constant 0 : i32
    %c0_i32_1 = arith.constant 0 : i32
    return %c0_i32, %c0_i32_0 : i32, i32
  }
  func.func @transform_8(%arg0: i32) -> (i32, i32) {
    %c0_i32 = arith.constant 0 : i32
    %c0_i32_0 = arith.constant 0 : i32
    %c0_i32_1 = arith.constant 0 : i32
    return %c0_i32, %c0_i32_0 : i32, i32
  }
  func.func @transform_9(%arg0: i32) -> (i32, i32) {
    %c0_i32 = arith.constant 0 : i32
    %c0_i32_0 = arith.constant 0 : i32
    %c0_i32_1 = arith.constant 0 : i32
    return %c0_i32, %c0_i32_0 : i32, i32
  }
  func.func @transform_10(%arg0: i32) -> (i32, i32) {
    %c0_i32 = arith.constant 0 : i32
    %c0_i32_0 = arith.constant 0 : i32
    %c0_i32_1 = arith.constant 0 : i32
    return %c0_i32, %c0_i32_0 : i32, i32
  }
  func.func @transform_11(%arg0: i32) -> (i32, i32) {
    %c0_i32 = arith.constant 0 : i32
    %c0_i32_0 = arith.constant 0 : i32
    return %arg0, %c0_i32 : i32, i32
  }
}

</mosaic_0001>

<llo_original>
// kernel: generator_forward.1
$region0: #{generator_forward.1}
  #allocation0 [shape = 'u32[]', space=smem, size = 0x4, offset = 0x4, fixed_abs, tag = 'smem constant byte address 0x4 - core index']
  #allocation1 [shape = 'u32[144,128]{1,0:T(1,128)}', space=vmem, size = 0x12000, scoped, tag = 'internal scratch']
  %s0 = inlined_call_operand.vmem [shape: bf16[16,512], index: 0, kind: input, shape index: {}]
  %s1 = inlined_call_operand.hbm [shape: bf16[512,256], index: 1, kind: input, shape index: {}]
  %s2 = inlined_call_operand.vmem [shape: f32[1,256], index: 2, kind: input, shape index: {}]
  %s3 = inlined_call_operand.hbm [shape: bf16[256,512], index: 3, kind: input, shape index: {}]
  %s4 = inlined_call_operand.vmem [shape: f32[1,512], index: 4, kind: input, shape index: {}]
  %s5 = inlined_call_operand.hbm [shape: bf16[512,512], index: 5, kind: input, shape index: {}]
  %s6 = inlined_call_operand.vmem [shape: f32[1,512], index: 6, kind: input, shape index: {}]
  %s7 = inlined_call_operand.hbm [shape: bf16[512,256], index: 7, kind: input, shape index: {}]
  %s8 = inlined_call_operand.vmem [shape: f32[1,256], index: 8, kind: input, shape index: {}]
  %s9 = inlined_call_operand.hbm [shape: bf16[256,896], index: 9, kind: input, shape index: {}]
  %s10 = inlined_call_operand.vmem [shape: f32[1,896], index: 10, kind: input, shape index: {}]
  %s11 = inlined_call_operand.vmem [shape: bf16[16,896], index: 11, kind: output, shape index: {}]
  %s12 = sld [smem:[#allocation0]]
  $region74: #{generator_forward.1} parent=0
    _
  %s14 = ssub.s32 1, %s12
  %s15 = scalar_select 0, %s14, %s12
  $region1: #{generator_forward.1} parent=0
    #allocation2 [shape = 'u8[262144]{0}', space=vmem, size = 0x40000, scoped, tag = 'input window, operand 1, single buffered']
    #allocation3 [shape = 's32[1]{0}', space=sflag, size = 0x4, scoped, tag = 'scoped memory for generator_forward.1']
    #allocation4 [shape = 'u8[262144]{0}', space=vmem, size = 0x40000, scoped, tag = 'input window, operand 3, single buffered']
    #allocation5 [shape = 's32[1]{0}', space=sflag, size = 0x4, scoped, tag = 'scoped memory for generator_forward.1']
    #allocation6 [shape = 'u8[524288]{0}', space=vmem, size = 0x80000, scoped, tag = 'input window, operand 5, single buffered']
    #allocation7 [shape = 'u8[262144]{0}', space=vmem, size = 0x40000, scoped, tag = 'input window, operand 7, single buffered']
    #allocation8 [shape = 's32[1]{0}', space=sflag, size = 0x4, scoped, tag = 'scoped memory for generator_forward.1']
    #allocation9 [shape = 'u8[458752]{0}', space=vmem, size = 0x70000, scoped, tag = 'input window, operand 9, single buffered']
    %16 = vsyncpa [#allocation3], 0
    %17 = vsyncpa [#allocation5], 0
    %18 = vsyncpa [#allocation8], 0
    // Predicated region
    $region2: #{generator_forward.1} parent=1 // pred_check
      _
    $region3: #{generator_forward.1} parent=1 // pred_check_branch
      %20 = sbr.rel (0) target = $region5
    $region4: #{generator_forward.1} parent=1 // pred_region
      _
    $region5: #{generator_forward.1} parent=1 // pred_fallthru
      _
    // Predicated region
    $region6: #{generator_forward.1} parent=1 // pred_check
      _
    $region7: #{generator_forward.1} parent=1 // pred_check_branch
      %22 = sbr.rel (0) target = $region9
    $region8: #{generator_forward.1} parent=1 // pred_region
      %s24 = ssub.s32 8192, 8192
      %25 = vsyncadd [#allocation3], %s24
      %s26 = sshll.u32 [#allocation2], 4
      %s27 = int_to_ptr.vmem [resolvable:$true] %s26
      %32 = dma.hbm_to_vmem [thread:$0]  %s1, 8192, %s27, [#allocation3], 128, 128, 8
    $region9: #{generator_forward.1} parent=1 // pred_fallthru
      _
    // Predicated region
    $region10: #{generator_forward.1} parent=1 // pred_check
      _
    $region11: #{generator_forward.1} parent=1 // pred_check_branch
      %34 = sbr.rel (0) target = $region13
    $region12: #{generator_forward.1} parent=1 // pred_region
      _
    $region13: #{generator_forward.1} parent=1 // pred_fallthru
      _
    // Predicated region
    $region14: #{generator_forward.1} parent=1 // pred_check
      _
    $region15: #{generator_forward.1} parent=1 // pred_check_branch
      %36 = sbr.rel (0) target = $region17
    $region16: #{generator_forward.1} parent=1 // pred_region
      %s38 = ssub.s32 8192, 8192
      %39 = vsyncadd [#allocation5], %s38
      %s40 = sshll.u32 [#allocation4], 4
      %s41 = int_to_ptr.vmem [resolvable:$true] %s40
      %46 = dma.hbm_to_vmem [thread:$0]  %s3, 8192, %s41, [#allocation5], 256, 256, 16
    $region17: #{generator_forward.1} parent=1 // pred_fallthru
      _
    // Predicated region
    $region18: #{generator_forward.1} parent=1 // pred_check
      _
    $region19: #{generator_forward.1} parent=1 // pred_check_branch
      %48 = sbr.rel (0) target = $region21
    $region20: #{generator_forward.1} parent=1 // pred_region
      _
    $region21: #{generator_forward.1} parent=1 // pred_fallthru
      _
    // Predicated region
    $region22: #{generator_forward.1} parent=1 // pred_check
      _
    $region23: #{generator_forward.1} parent=1 // pred_check_branch
      %50 = sbr.rel (0) target = $region25
    $region24: #{generator_forward.1} parent=1 // pred_region
      %s52 = ssub.s32 16384, 16384
      %53 = vsyncadd [#allocation5], %s52
      %s54 = sshll.u32 [#allocation6], 4
      %s55 = int_to_ptr.vmem [resolvable:$true] %s54
      %60 = dma.hbm_to_vmem [thread:$0]  %s5, 16384, %s55, [#allocation5], 256, 256, 16
    $region25: #{generator_forward.1} parent=1 // pred_fallthru
      _
    // Predicated region
    $region26: #{generator_forward.1} parent=1 // pred_check
      _
    $region27: #{generator_forward.1} parent=1 // pred_check_branch
      %62 = sbr.rel (0) target = $region29
    $region28: #{generator_forward.1} parent=1 // pred_region
      _
    $region29: #{generator_forward.1} parent=1 // pred_fallthru
      _
    // Predicated region
    $region30: #{generator_forward.1} parent=1 // pred_check
      _
    $region31: #{generator_forward.1} parent=1 // pred_check_branch
      %64 = sbr.rel (0) target = $region33
    $region32: #{generator_forward.1} parent=1 // pred_region
      %s66 = ssub.s32 8192, 8192
      %67 = vsyncadd [#allocation8], %s66
      %s68 = sshll.u32 [#allocation7], 4
      %s69 = int_to_ptr.vmem [resolvable:$true] %s68
      %74 = dma.hbm_to_vmem [thread:$0]  %s7, 8192, %s69, [#allocation8], 128, 128, 8
    $region33: #{generator_forward.1} parent=1 // pred_fallthru
      _
    // Predicated region
    $region34: #{generator_forward.1} parent=1 // pred_check
      _
    $region35: #{generator_forward.1} parent=1 // pred_check_branch
      %76 = sbr.rel (0) target = $region37
    $region36: #{generator_forward.1} parent=1 // pred_region
      _
    $region37: #{generator_forward.1} parent=1 // pred_fallthru
      _
    // Predicated region
    $region38: #{generator_forward.1} parent=1 // pred_check
      _
    $region39: #{generator_forward.1} parent=1 // pred_check_branch
      %78 = sbr.rel (0) target = $region41
    $region40: #{generator_forward.1} parent=1 // pred_region
      %s80 = ssub.s32 14336, 14336
      %81 = vsyncadd [#allocation8], %s80
      %s82 = sshll.u32 [#allocation9], 4
      %s83 = int_to_ptr.vmem [resolvable:$true] %s82
      %88 = dma.hbm_to_vmem [thread:$0]  %s9, 14336, %s83, [#allocation8], 448, 448, 28
    $region41: #{generator_forward.1} parent=1 // pred_fallthru
      _
    // Predicated region
    $region42: #{generator_forward.1} parent=1 // pred_check
      _
    $region43: #{generator_forward.1} parent=1 // pred_check_branch
      %90 = sbr.rel (0) target = $region45
    $region44: #{generator_forward.1} parent=1 // pred_region
      _
    $region45: #{generator_forward.1} parent=1 // pred_fallthru
      _
    // Predicated region
    $region46: #{generator_forward.1} parent=1 // pred_check
      _
    $region47: #{generator_forward.1} parent=1 // pred_check_branch
      %92 = sbr.rel (0) target = $region49
    $region48: #{generator_forward.1} parent=1 // pred_region
      %93 = dma.done [#allocation3], 8192
    $region49: #{generator_forward.1} parent=1 // pred_fallthru
      _
    // Predicated region
    $region50: #{generator_forward.1} parent=1 // pred_check
      _
    $region51: #{generator_forward.1} parent=1 // pred_check_branch
      %95 = sbr.rel (0) target = $region53
    $region52: #{generator_forward.1} parent=1 // pred_region
      %96 = dma.done [#allocation5], 8192
    $region53: #{generator_forward.1} parent=1 // pred_fallthru
      _
    // Predicated region
    $region54: #{generator_forward.1} parent=1 // pred_check
      _
    $region55: #{generator_forward.1} parent=1 // pred_check_branch
      %98 = sbr.rel (0) target = $region57
    $region56: #{generator_forward.1} parent=1 // pred_region
      %99 = dma.done [#allocation5], 16384
    $region57: #{generator_forward.1} parent=1 // pred_fallthru
      _
    // Predicated region
    $region58: #{generator_forward.1} parent=1 // pred_check
      _
    $region59: #{generator_forward.1} parent=1 // pred_check_branch
      %101 = sbr.rel (0) target = $region61
    $region60: #{generator_forward.1} parent=1 // pred_region
      %102 = dma.done [#allocation8], 8192
    $region61: #{generator_forward.1} parent=1 // pred_fallthru
      _
    // Predicated region
    $region62: #{generator_forward.1} parent=1 // pred_check
      _
    $region63: #{generator_forward.1} parent=1 // pred_check_branch
      %104 = sbr.rel (0) target = $region65
    $region64: #{generator_forward.1} parent=1 // pred_region
      %105 = dma.done [#allocation8], 14336
    $region65: #{generator_forward.1} parent=1 // pred_fallthru
      _
    %v107 = vld [vmem:[%s0] sm:$0xff]
    %v108 = vld [vmem:[%s0 + $0x8] sm:$0xff]
    %v109 = vld [vmem:[%s0 + $0x10] sm:$0xff]
    %v110 = vld [vmem:[%s0 + $0x18] sm:$0xff]
    %v111 = vld [vmem:[#allocation2] sm:$0xff]
    %v112 = vld [vmem:[#allocation2 + $0x8] sm:$0xff]
    %v113 = vld [vmem:[#allocation2 + $0x10] sm:$0xff]
    %v114 = vld [vmem:[#allocation2 + $0x18] sm:$0xff]
    %v115 = vld [vmem:[#allocation2 + $0x20] sm:$0xff]
    %v116 = vld [vmem:[#allocation2 + $0x28] sm:$0xff]
    %v117 = vld [vmem:[#allocation2 + $0x30] sm:$0xff]
    %v118 = vld [vmem:[#allocation2 + $0x38] sm:$0xff]
    %v119 = vld [vmem:[#allocation2 + $0x40] sm:$0xff]
    %v120 = vld [vmem:[#allocation2 + $0x48] sm:$0xff]
    %v121 = vld [vmem:[#allocation2 + $0x50] sm:$0xff]
    %v122 = vld [vmem:[#allocation2 + $0x58] sm:$0xff]
    %v123 = vld [vmem:[#allocation2 + $0x60] sm:$0xff]
    %v124 = vld [vmem:[#allocation2 + $0x68] sm:$0xff]
    %v125 = vld [vmem:[#allocation2 + $0x70] sm:$0xff]
    %v126 = vld [vmem:[#allocation2 + $0x78] sm:$0xff]
    %v127 = vld [vmem:[#allocation2 + $0x80] sm:$0xff]
    %v128 = vld [vmem:[#allocation2 + $0x88] sm:$0xff]
    %v129 = vld [vmem:[#allocation2 + $0x90] sm:$0xff]
    %v130 = vld [vmem:[#allocation2 + $0x98] sm:$0xff]
    %v131 = vld [vmem:[#allocation2 + $0xa0] sm:$0xff]
    %v132 = vld [vmem:[#allocation2 + $0xa8] sm:$0xff]
    %v133 = vld [vmem:[#allocation2 + $0xb0] sm:$0xff]
    %v134 = vld [vmem:[#allocation2 + $0xb8] sm:$0xff]
    %v135 = vld [vmem:[#allocation2 + $0xc0] sm:$0xff]
    %v136 = vld [vmem:[#allocation2 + $0xc8] sm:$0xff]
    %v137 = vld [vmem:[#allocation2 + $0xd0] sm:$0xff]
    %v138 = vld [vmem:[#allocation2 + $0xd8] sm:$0xff]
    %v139 = vld [vmem:[#allocation2 + $0xe0] sm:$0xff]
    %v140 = vld [vmem:[#allocation2 + $0xe8] sm:$0xff]
    %v141 = vld [vmem:[#allocation2 + $0xf0] sm:$0xff]
    %v142 = vld [vmem:[#allocation2 + $0xf8] sm:$0xff]
    %v143 = vld [vmem:[#allocation2 + $0x100] sm:$0xff]
    %v144 = vld [vmem:[#allocation2 + $0x108] sm:$0xff]
    %v145 = vld [vmem:[#allocation2 + $0x110] sm:$0xff]
    %v146 = vld [vmem:[#allocation2 + $0x118] sm:$0xff]
    %v147 = vld [vmem:[#allocation2 + $0x120] sm:$0xff]
    %v148 = vld [vmem:[#allocation2 + $0x128] sm:$0xff]
    %v149 = vld [vmem:[#allocation2 + $0x130] sm:$0xff]
    %v150 = vld [vmem:[#allocation2 + $0x138] sm:$0xff]
    %v151 = vld [vmem:[#allocation2 + $0x140] sm:$0xff]
    %v152 = vld [vmem:[#allocation2 + $0x148] sm:$0xff]
    %v153 = vld [vmem:[#allocation2 + $0x150] sm:$0xff]
    %v154 = vld [vmem:[#allocation2 + $0x158] sm:$0xff]
    %v155 = vld [vmem:[#allocation2 + $0x160] sm:$0xff]
    %v156 = vld [vmem:[#allocation2 + $0x168] sm:$0xff]
    %v157 = vld [vmem:[#allocation2 + $0x170] sm:$0xff]
    %v158 = vld [vmem:[#allocation2 + $0x178] sm:$0xff]
    %v159 = vld [vmem:[#allocation2 + $0x180] sm:$0xff]
    %v160 = vld [vmem:[#allocation2 + $0x188] sm:$0xff]
    %v161 = vld [vmem:[#allocation2 + $0x190] sm:$0xff]
    %v162 = vld [vmem:[#allocation2 + $0x198] sm:$0xff]
    %v163 = vld [vmem:[#allocation2 + $0x1a0] sm:$0xff]
    %v164 = vld [vmem:[#allocation2 + $0x1a8] sm:$0xff]
    %v165 = vld [vmem:[#allocation2 + $0x1b0] sm:$0xff]
    %v166 = vld [vmem:[#allocation2 + $0x1b8] sm:$0xff]
    %v167 = vld [vmem:[#allocation2 + $0x1c0] sm:$0xff]
    %v168 = vld [vmem:[#allocation2 + $0x1c8] sm:$0xff]
    %v169 = vld [vmem:[#allocation2 + $0x1d0] sm:$0xff]
    %v170 = vld [vmem:[#allocation2 + $0x1d8] sm:$0xff]
    %v171 = vld [vmem:[#allocation2 + $0x1e0] sm:$0xff]
    %v172 = vld [vmem:[#allocation2 + $0x1e8] sm:$0xff]
    %v173 = vld [vmem:[#allocation2 + $0x1f0] sm:$0xff]
    %v174 = vld [vmem:[#allocation2 + $0x1f8] sm:$0xff]
    %v175 = vld [vmem:[%s2] sm:$0x3]
    %v177 = vlaneseq
    %v178 = vshrl.u32 %v177, 7
    %v179 = vsub.s32 0, %v178
    %v180 = vrot.slane %v175, %v179
    %v181 = vlaneseq
    %v182 = vshrl.u32 %v181, 7
    %v183 = vsub.s32 1, %v182
    %v184 = vrot.slane %v175, %v183
    %v191 = vunpack.c.l.b16 %v107
    %v192 = vunpack.c.h.b16 %v107
    %v193 = vunpack.c.l.b16 %v108
    %v194 = vunpack.c.h.b16 %v108
    %v195 = vunpack.c.l.b16 %v109
    %v196 = vunpack.c.h.b16 %v109
    %v197 = vunpack.c.l.b16 %v110
    %v198 = vunpack.c.h.b16 %v110
    %v199 = vpack.c.b16 %v195, %v191
    %v200 = vpack.c.b16 %v196, %v192
    %v201 = vpack.c.b16 %v197, %v193
    %v202 = vpack.c.b16 %v198, %v194
    %v271 = vunpack.c.l.b16 %v111
    %v272 = vunpack.c.h.b16 %v111
    %v273 = vunpack.c.l.b16 %v112
    %v274 = vunpack.c.h.b16 %v112
    %v275 = vunpack.c.l.b16 %v113
    %v276 = vunpack.c.h.b16 %v113
    %v277 = vunpack.c.l.b16 %v114
    %v278 = vunpack.c.h.b16 %v114
    %v279 = vunpack.c.l.b16 %v115
    %v280 = vunpack.c.h.b16 %v115
    %v281 = vunpack.c.l.b16 %v116
    %v282 = vunpack.c.h.b16 %v116
    %v283 = vunpack.c.l.b16 %v117
    %v284 = vunpack.c.h.b16 %v117
    %v285 = vunpack.c.l.b16 %v118
    %v286 = vunpack.c.h.b16 %v118
    %v287 = vunpack.c.l.b16 %v119
    %v288 = vunpack.c.h.b16 %v119
    %v289 = vunpack.c.l.b16 %v120
    %v290 = vunpack.c.h.b16 %v120
    %v291 = vunpack.c.l.b16 %v121
    %v292 = vunpack.c.h.b16 %v121
    %v293 = vunpack.c.l.b16 %v122
    %v294 = vunpack.c.h.b16 %v122
    %v295 = vunpack.c.l.b16 %v123
    %v296 = vunpack.c.h.b16 %v123
    %v297 = vunpack.c.l.b16 %v124
    %v298 = vunpack.c.h.b16 %v124
    %v299 = vunpack.c.l.b16 %v125
    %v300 = vunpack.c.h.b16 %v125
    %v301 = vunpack.c.l.b16 %v126
    %v302 = vunpack.c.h.b16 %v126
    %v303 = vunpack.c.l.b16 %v127
    %v304 = vunpack.c.h.b16 %v127
    %v305 = vunpack.c.l.b16 %v128
    %v306 = vunpack.c.h.b16 %v128
    %v307 = vunpack.c.l.b16 %v129
    %v308 = vunpack.c.h.b16 %v129
    %v309 = vunpack.c.l.b16 %v130
    %v310 = vunpack.c.h.b16 %v130
    %v311 = vunpack.c.l.b16 %v131
    %v312 = vunpack.c.h.b16 %v131
    %v313 = vunpack.c.l.b16 %v132
    %v314 = vunpack.c.h.b16 %v132
    %v315 = vunpack.c.l.b16 %v133
    %v316 = vunpack.c.h.b16 %v133
    %v317 = vunpack.c.l.b16 %v134
    %v318 = vunpack.c.h.b16 %v134
    %v319 = vunpack.c.l.b16 %v135
    %v320 = vunpack.c.h.b16 %v135
    %v321 = vunpack.c.l.b16 %v136
    %v322 = vunpack.c.h.b16 %v136
    %v323 = vunpack.c.l.b16 %v137
    %v324 = vunpack.c.h.b16 %v137
    %v325 = vunpack.c.l.b16 %v138
    %v326 = vunpack.c.h.b16 %v138
    %v327 = vunpack.c.l.b16 %v139
    %v328 = vunpack.c.h.b16 %v139
    %v329 = vunpack.c.l.b16 %v140
    %v330 = vunpack.c.h.b16 %v140
    %v331 = vunpack.c.l.b16 %v141
    %v332 = vunpack.c.h.b16 %v141
    %v333 = vunpack.c.l.b16 %v142
    %v334 = vunpack.c.h.b16 %v142
    %v335 = vunpack.c.l.b16 %v143
    %v336 = vunpack.c.h.b16 %v143
    %v337 = vunpack.c.l.b16 %v144
    %v338 = vunpack.c.h.b16 %v144
    %v339 = vunpack.c.l.b16 %v145
    %v340 = vunpack.c.h.b16 %v145
    %v341 = vunpack.c.l.b16 %v146
    %v342 = vunpack.c.h.b16 %v146
    %v343 = vunpack.c.l.b16 %v147
    %v344 = vunpack.c.h.b16 %v147
    %v345 = vunpack.c.l.b16 %v148
    %v346 = vunpack.c.h.b16 %v148
    %v347 = vunpack.c.l.b16 %v149
    %v348 = vunpack.c.h.b16 %v149
    %v349 = vunpack.c.l.b16 %v150
    %v350 = vunpack.c.h.b16 %v150
    %v351 = vunpack.c.l.b16 %v151
    %v352 = vunpack.c.h.b16 %v151
    %v353 = vunpack.c.l.b16 %v152
    %v354 = vunpack.c.h.b16 %v152
    %v355 = vunpack.c.l.b16 %v153
    %v356 = vunpack.c.h.b16 %v153
    %v357 = vunpack.c.l.b16 %v154
    %v358 = vunpack.c.h.b16 %v154
    %v359 = vunpack.c.l.b16 %v155
    %v360 = vunpack.c.h.b16 %v155
    %v361 = vunpack.c.l.b16 %v156
    %v362 = vunpack.c.h.b16 %v156
    %v363 = vunpack.c.l.b16 %v157
    %v364 = vunpack.c.h.b16 %v157
    %v365 = vunpack.c.l.b16 %v158
    %v366 = vunpack.c.h.b16 %v158
    %v367 = vunpack.c.l.b16 %v159
    %v368 = vunpack.c.h.b16 %v159
    %v369 = vunpack.c.l.b16 %v160
    %v370 = vunpack.c.h.b16 %v160
    %v371 = vunpack.c.l.b16 %v161
    %v372 = vunpack.c.h.b16 %v161
    %v373 = vunpack.c.l.b16 %v162
    %v374 = vunpack.c.h.b16 %v162
    %v375 = vunpack.c.l.b16 %v163
    %v376 = vunpack.c.h.b16 %v163
    %v377 = vunpack.c.l.b16 %v164
    %v378 = vunpack.c.h.b16 %v164
    %v379 = vunpack.c.l.b16 %v165
    %v380 = vunpack.c.h.b16 %v165
    %v381 = vunpack.c.l.b16 %v166
    %v382 = vunpack.c.h.b16 %v166
    %v383 = vunpack.c.l.b16 %v167
    %v384 = vunpack.c.h.b16 %v167
    %v385 = vunpack.c.l.b16 %v168
    %v386 = vunpack.c.h.b16 %v168
    %v387 = vunpack.c.l.b16 %v169
    %v388 = vunpack.c.h.b16 %v169
    %v389 = vunpack.c.l.b16 %v170
    %v390 = vunpack.c.h.b16 %v170
    %v391 = vunpack.c.l.b16 %v171
    %v392 = vunpack.c.h.b16 %v171
    %v393 = vunpack.c.l.b16 %v172
    %v394 = vunpack.c.h.b16 %v172
    %v395 = vunpack.c.l.b16 %v173
    %v396 = vunpack.c.h.b16 %v173
    %v397 = vunpack.c.l.b16 %v174
    %v398 = vunpack.c.h.b16 %v174
    %v399 = vpack.c.b16 %v273, %v271
    %v400 = vpack.c.b16 %v274, %v272
    %v401 = vpack.c.b16 %v277, %v275
    %v402 = vpack.c.b16 %v278, %v276
    %v403 = vpack.c.b16 %v281, %v279
    %v404 = vpack.c.b16 %v282, %v280
    %v405 = vpack.c.b16 %v285, %v283
    %v406 = vpack.c.b16 %v286, %v284
    %v407 = vpack.c.b16 %v289, %v287
    %v408 = vpack.c.b16 %v290, %v288
    %v409 = vpack.c.b16 %v293, %v291
    %v410 = vpack.c.b16 %v294, %v292
    %v411 = vpack.c.b16 %v297, %v295
    %v412 = vpack.c.b16 %v298, %v296
    %v413 = vpack.c.b16 %v301, %v299
    %v414 = vpack.c.b16 %v302, %v300
    %v415 = vpack.c.b16 %v305, %v303
    %v416 = vpack.c.b16 %v306, %v304
    %v417 = vpack.c.b16 %v309, %v307
    %v418 = vpack.c.b16 %v310, %v308
    %v419 = vpack.c.b16 %v313, %v311
    %v420 = vpack.c.b16 %v314, %v312
    %v421 = vpack.c.b16 %v317, %v315
    %v422 = vpack.c.b16 %v318, %v316
    %v423 = vpack.c.b16 %v321, %v319
    %v424 = vpack.c.b16 %v322, %v320
    %v425 = vpack.c.b16 %v325, %v323
    %v426 = vpack.c.b16 %v326, %v324
    %v427 = vpack.c.b16 %v329, %v327
    %v428 = vpack.c.b16 %v330, %v328
    %v429 = vpack.c.b16 %v333, %v331
    %v430 = vpack.c.b16 %v334, %v332
    %v431 = vpack.c.b16 %v337, %v335
    %v432 = vpack.c.b16 %v338, %v336
    %v433 = vpack.c.b16 %v341, %v339
    %v434 = vpack.c.b16 %v342, %v340
    %v435 = vpack.c.b16 %v345, %v343
    %v436 = vpack.c.b16 %v346, %v344
    %v437 = vpack.c.b16 %v349, %v347
    %v438 = vpack.c.b16 %v350, %v348
    %v439 = vpack.c.b16 %v353, %v351
    %v440 = vpack.c.b16 %v354, %v352
    %v441 = vpack.c.b16 %v357, %v355
    %v442 = vpack.c.b16 %v358, %v356
    %v443 = vpack.c.b16 %v361, %v359
    %v444 = vpack.c.b16 %v362, %v360
    %v445 = vpack.c.b16 %v365, %v363
    %v446 = vpack.c.b16 %v366, %v364
    %v447 = vpack.c.b16 %v369, %v367
    %v448 = vpack.c.b16 %v370, %v368
    %v449 = vpack.c.b16 %v373, %v371
    %v450 = vpack.c.b16 %v374, %v372
    %v451 = vpack.c.b16 %v377, %v375
    %v452 = vpack.c.b16 %v378, %v376
    %v453 = vpack.c.b16 %v381, %v379
    %v454 = vpack.c.b16 %v382, %v380
    %v455 = vpack.c.b16 %v385, %v383
    %v456 = vpack.c.b16 %v386, %v384
    %v457 = vpack.c.b16 %v389, %v387
    %v458 = vpack.c.b16 %v390, %v388
    %v459 = vpack.c.b16 %v393, %v391
    %v460 = vpack.c.b16 %v394, %v392
    %v461 = vpack.c.b16 %v397, %v395
    %v462 = vpack.c.b16 %v398, %v396
    %527 = vmatprep.subr.bf16.mxu0 %v400
    %528 = vmatpush1.bf16.msra.mxu0 %v399
    %529 = vmatprep.subr.bf16.mxu0 %v402
    %530 = vmatpush1.bf16.msra.mxu0 %v401
    %531 = vmatprep.subr.bf16.mxu0 %v404
    %532 = vmatpush1.bf16.msra.mxu0 %v403
    %533 = vmatprep.subr.bf16.mxu0 %v406
    %534 = vmatpush1.bf16.msra.mxu0 %v405
    %535 = vmatprep.subr.bf16.mxu0 %v408
    %536 = vmatpush1.bf16.msra.mxu0 %v407
    %537 = vmatprep.subr.bf16.mxu0 %v410
    %538 = vmatpush1.bf16.msra.mxu0 %v409
    %539 = vmatprep.subr.bf16.mxu0 %v412
    %540 = vmatpush1.bf16.msra.mxu0 %v411
    %541 = vmatprep.subr.bf16.mxu0 %v414
    %542 = vmatpush1.bf16.msra.mxu0 %v413
    %543 = vmatprep.subr.bf16.mxu0 %v416
    %544 = vmatpush1.bf16.msra.mxu0 %v415
    %545 = vmatprep.subr.bf16.mxu0 %v418
    %546 = vmatpush1.bf16.msra.mxu0 %v417
    %547 = vmatprep.subr.bf16.mxu0 %v420
    %548 = vmatpush1.bf16.msra.mxu0 %v419
    %549 = vmatprep.subr.bf16.mxu0 %v422
    %550 = vmatpush1.bf16.msra.mxu0 %v421
    %551 = vmatprep.subr.bf16.mxu0 %v424
    %552 = vmatpush1.bf16.msra.mxu0 %v423
    %553 = vmatprep.subr.bf16.mxu0 %v426
    %554 = vmatpush1.bf16.msra.mxu0 %v425
    %555 = vmatprep.subr.bf16.mxu0 %v428
    %556 = vmatpush1.bf16.msra.mxu0 %v427
    %557 = vmatprep.subr.bf16.mxu0 %v430
    %558 = vmatpush1.bf16.msra.mxu0 %v429
    %559 = vmatprep.mubr.bf16.mxu0 %v200
    %560 = vmatmul.mubr.bf16.gmra.mrb[0].mxu0 %v199
    %v561 = vpop.f32.mrb[0].mxu0
    %v562 = vadd.f32 %v180, %v561
    %v563 = vpop.f32.mrb[0].mxu0
    %v564 = vadd.f32 %v184, %v563
    %v565 = vpop.f32.mrb[0].mxu0
    %v566 = vadd.f32 %v180, %v565
    %v567 = vpop.f32.mrb[0].mxu0
    %v568 = vadd.f32 %v184, %v567
    %569 = vdwg.mxu0
    %570 = vmatprep.subr.bf16.mxu0 %v432
    %571 = vmatpush1.bf16.msra.mxu0 %v431
    %572 = vmatprep.subr.bf16.mxu0 %v434
    %573 = vmatpush1.bf16.msra.mxu0 %v433
    %574 = vmatprep.subr.bf16.mxu0 %v436
    %575 = vmatpush1.bf16.msra.mxu0 %v435
    %576 = vmatprep.subr.bf16.mxu0 %v438
    %577 = vmatpush1.bf16.msra.mxu0 %v437
    %578 = vmatprep.subr.bf16.mxu0 %v440
    %579 = vmatpush1.bf16.msra.mxu0 %v439
    %580 = vmatprep.subr.bf16.mxu0 %v442
    %581 = vmatpush1.bf16.msra.mxu0 %v441
    %582 = vmatprep.subr.bf16.mxu0 %v444
    %583 = vmatpush1.bf16.msra.mxu0 %v443
    %584 = vmatprep.subr.bf16.mxu0 %v446
    %585 = vmatpush1.bf16.msra.mxu0 %v445
    %586 = vmatprep.subr.bf16.mxu0 %v448
    %587 = vmatpush1.bf16.msra.mxu0 %v447
    %588 = vmatprep.subr.bf16.mxu0 %v450
    %589 = vmatpush1.bf16.msra.mxu0 %v449
    %590 = vmatprep.subr.bf16.mxu0 %v452
    %591 = vmatpush1.bf16.msra.mxu0 %v451
    %592 = vmatprep.subr.bf16.mxu0 %v454
    %593 = vmatpush1.bf16.msra.mxu0 %v453
    %594 = vmatprep.subr.bf16.mxu0 %v456
    %595 = vmatpush1.bf16.msra.mxu0 %v455
    %596 = vmatprep.subr.bf16.mxu0 %v458
    %597 = vmatpush1.bf16.msra.mxu0 %v457
    %598 = vmatprep.subr.bf16.mxu0 %v460
    %599 = vmatpush1.bf16.msra.mxu0 %v459
    %600 = vmatprep.subr.bf16.mxu0 %v462
    %601 = vmatpush1.bf16.msra.mxu0 %v461
    %602 = vmatprep.mubr.bf16.mxu0 %v202
    %603 = vmatmul.mubr.bf16.gmra.mrb[0].mxu0 %v201
    %v604 = vpop.f32.mrb[0].mxu0
    %v605 = vadd.f32 %v562, %v604
    %v606 = vpop.f32.mrb[0].mxu0
    %v607 = vadd.f32 %v564, %v606
    %v608 = vpop.f32.mrb[0].mxu0
    %v609 = vadd.f32 %v566, %v608
    %v610 = vpop.f32.mrb[0].mxu0
    %v611 = vadd.f32 %v568, %v610
    %612 = vdwg.mxu0
    %vm613 = vcmp.gt.f32.partialorder %v605, 0.0
    %vm614 = vcmp.gt.f32.partialorder %v607, 0.0
    %vm615 = vcmp.gt.f32.partialorder %v609, 0.0
    %vm616 = vcmp.gt.f32.partialorder %v611, 0.0
    %v617 = vmul.f32 %v605, 0.01
    %v618 = vmul.f32 %v607, 0.01
    %v619 = vmul.f32 %v609, 0.01
    %v620 = vmul.f32 %v611, 0.01
    %v621 = vsel %vm613, %v605, %v617
    %v622 = vsel %vm614, %v607, %v618
    %v623 = vsel %vm615, %v609, %v619
    %v624 = vsel %vm616, %v611, %v620
    %v625 = vpack.c.bf16 %v623, %v621
    %v626 = vpack.c.bf16 %v624, %v622
    %v627 = vld [vmem:[#allocation4] sm:$0xff]
    %v628 = vld [vmem:[#allocation4 + $0x8] sm:$0xff]
    %v629 = vld [vmem:[#allocation4 + $0x10] sm:$0xff]
    %v630 = vld [vmem:[#allocation4 + $0x18] sm:$0xff]
    %v631 = vld [vmem:[#allocation4 + $0x20] sm:$0xff]
    %v632 = vld [vmem:[#allocation4 + $0x28] sm:$0xff]
    %v633 = vld [vmem:[#allocation4 + $0x30] sm:$0xff]
    %v634 = vld [vmem:[#allocation4 + $0x38] sm:$0xff]
    %v635 = vld [vmem:[#allocation4 + $0x40] sm:$0xff]
    %v636 = vld [vmem:[#allocation4 + $0x48] sm:$0xff]
    %v637 = vld [vmem:[#allocation4 + $0x50] sm:$0xff]
    %v638 = vld [vmem:[#allocation4 + $0x58] sm:$0xff]
    %v639 = vld [vmem:[#allocation4 + $0x60] sm:$0xff]
    %v640 = vld [vmem:[#allocation4 + $0x68] sm:$0xff]
    %v641 = vld [vmem:[#allocation4 + $0x70] sm:$0xff]
    %v642 = vld [vmem:[#allocation4 + $0x78] sm:$0xff]
    %v643 = vld [vmem:[#allocation4 + $0x80] sm:$0xff]
    %v644 = vld [vmem:[#allocation4 + $0x88] sm:$0xff]
    %v645 = vld [vmem:[#allocation4 + $0x90] sm:$0xff]
    %v646 = vld [vmem:[#allocation4 + $0x98] sm:$0xff]
    %v647 = vld [vmem:[#allocation4 + $0xa0] sm:$0xff]
    %v648 = vld [vmem:[#allocation4 + $0xa8] sm:$0xff]
    %v649 = vld [vmem:[#allocation4 + $0xb0] sm:$0xff]
    %v650 = vld [vmem:[#allocation4 + $0xb8] sm:$0xff]
    %v651 = vld [vmem:[#allocation4 + $0xc0] sm:$0xff]
    %v652 = vld [vmem:[#allocation4 + $0xc8] sm:$0xff]
    %v653 = vld [vmem:[#allocation4 + $0xd0] sm:$0xff]
    %v654 = vld [vmem:[#allocation4 + $0xd8] sm:$0xff]
    %v655 = vld [vmem:[#allocation4 + $0xe0] sm:$0xff]
    %v656 = vld [vmem:[#allocation4 + $0xe8] sm:$0xff]
    %v657 = vld [vmem:[#allocation4 + $0xf0] sm:$0xff]
    %v658 = vld [vmem:[#allocation4 + $0xf8] sm:$0xff]
    %v659 = vld [vmem:[#allocation4 + $0x100] sm:$0xff]
    %v660 = vld [vmem:[#allocation4 + $0x108] sm:$0xff]
    %v661 = vld [vmem:[#allocation4 + $0x110] sm:$0xff]
    %v662 = vld [vmem:[#allocation4 + $0x118] sm:$0xff]
    %v663 = vld [vmem:[#allocation4 + $0x120] sm:$0xff]
    %v664 = vld [vmem:[#allocation4 + $0x128] sm:$0xff]
    %v665 = vld [vmem:[#allocation4 + $0x130] sm:$0xff]
    %v666 = vld [vmem:[#allocation4 + $0x138] sm:$0xff]
    %v667 = vld [vmem:[#allocation4 + $0x140] sm:$0xff]
    %v668 = vld [vmem:[#allocation4 + $0x148] sm:$0xff]
    %v669 = vld [vmem:[#allocation4 + $0x150] sm:$0xff]
    %v670 = vld [vmem:[#allocation4 + $0x158] sm:$0xff]
    %v671 = vld [vmem:[#allocation4 + $0x160] sm:$0xff]
    %v672 = vld [vmem:[#allocation4 + $0x168] sm:$0xff]
    %v673 = vld [vmem:[#allocation4 + $0x170] sm:$0xff]
    %v674 = vld [vmem:[#allocation4 + $0x178] sm:$0xff]
    %v675 = vld [vmem:[#allocation4 + $0x180] sm:$0xff]
    %v676 = vld [vmem:[#allocation4 + $0x188] sm:$0xff]
    %v677 = vld [vmem:[#allocation4 + $0x190] sm:$0xff]
    %v678 = vld [vmem:[#allocation4 + $0x198] sm:$0xff]
    %v679 = vld [vmem:[#allocation4 + $0x1a0] sm:$0xff]
    %v680 = vld [vmem:[#allocation4 + $0x1a8] sm:$0xff]
    %v681 = vld [vmem:[#allocation4 + $0x1b0] sm:$0xff]
    %v682 = vld [vmem:[#allocation4 + $0x1b8] sm:$0xff]
    %v683 = vld [vmem:[#allocation4 + $0x1c0] sm:$0xff]
    %v684 = vld [vmem:[#allocation4 + $0x1c8] sm:$0xff]
    %v685 = vld [vmem:[#allocation4 + $0x1d0] sm:$0xff]
    %v686 = vld [vmem:[#allocation4 + $0x1d8] sm:$0xff]
    %v687 = vld [vmem:[#allocation4 + $0x1e0] sm:$0xff]
    %v688 = vld [vmem:[#allocation4 + $0x1e8] sm:$0xff]
    %v689 = vld [vmem:[#allocation4 + $0x1f0] sm:$0xff]
    %v690 = vld [vmem:[#allocation4 + $0x1f8] sm:$0xff]
    %v691 = vld [vmem:[%s4] sm:$0xf]
    %v693 = vlaneseq
    %v694 = vshrl.u32 %v693, 7
    %v695 = vsub.s32 0, %v694
    %v696 = vrot.slane %v691, %v695
    %v697 = vlaneseq
    %v698 = vshrl.u32 %v697, 7
    %v699 = vsub.s32 1, %v698
    %v700 = vrot.slane %v691, %v699
    %v701 = vlaneseq
    %v702 = vshrl.u32 %v701, 7
    %v703 = vsub.s32 2, %v702
    %v704 = vrot.slane %v691, %v703
    %v705 = vlaneseq
    %v706 = vshrl.u32 %v705, 7
    %v707 = vsub.s32 3, %v706
    %v708 = vrot.slane %v691, %v707
    %v777 = vunpack.c.l.b16 %v627
    %v778 = vunpack.c.h.b16 %v627
    %v779 = vunpack.c.l.b16 %v628
    %v780 = vunpack.c.h.b16 %v628
    %v781 = vunpack.c.l.b16 %v629
    %v782 = vunpack.c.h.b16 %v629
    %v783 = vunpack.c.l.b16 %v630
    %v784 = vunpack.c.h.b16 %v630
    %v785 = vunpack.c.l.b16 %v631
    %v786 = vunpack.c.h.b16 %v631
    %v787 = vunpack.c.l.b16 %v632
    %v788 = vunpack.c.h.b16 %v632
    %v789 = vunpack.c.l.b16 %v633
    %v790 = vunpack.c.h.b16 %v633
    %v791 = vunpack.c.l.b16 %v634
    %v792 = vunpack.c.h.b16 %v634
    %v793 = vunpack.c.l.b16 %v635
    %v794 = vunpack.c.h.b16 %v635
    %v795 = vunpack.c.l.b16 %v636
    %v796 = vunpack.c.h.b16 %v636
    %v797 = vunpack.c.l.b16 %v637
    %v798 = vunpack.c.h.b16 %v637
    %v799 = vunpack.c.l.b16 %v638
    %v800 = vunpack.c.h.b16 %v638
    %v801 = vunpack.c.l.b16 %v639
    %v802 = vunpack.c.h.b16 %v639
    %v803 = vunpack.c.l.b16 %v640
    %v804 = vunpack.c.h.b16 %v640
    %v805 = vunpack.c.l.b16 %v641
    %v806 = vunpack.c.h.b16 %v641
    %v807 = vunpack.c.l.b16 %v642
    %v808 = vunpack.c.h.b16 %v642
    %v809 = vunpack.c.l.b16 %v643
    %v810 = vunpack.c.h.b16 %v643
    %v811 = vunpack.c.l.b16 %v644
    %v812 = vunpack.c.h.b16 %v644
    %v813 = vunpack.c.l.b16 %v645
    %v814 = vunpack.c.h.b16 %v645
    %v815 = vunpack.c.l.b16 %v646
    %v816 = vunpack.c.h.b16 %v646
    %v817 = vunpack.c.l.b16 %v647
    %v818 = vunpack.c.h.b16 %v647
    %v819 = vunpack.c.l.b16 %v648
    %v820 = vunpack.c.h.b16 %v648
    %v821 = vunpack.c.l.b16 %v649
    %v822 = vunpack.c.h.b16 %v649
    %v823 = vunpack.c.l.b16 %v650
    %v824 = vunpack.c.h.b16 %v650
    %v825 = vunpack.c.l.b16 %v651
    %v826 = vunpack.c.h.b16 %v651
    %v827 = vunpack.c.l.b16 %v652
    %v828 = vunpack.c.h.b16 %v652
    %v829 = vunpack.c.l.b16 %v653
    %v830 = vunpack.c.h.b16 %v653
    %v831 = vunpack.c.l.b16 %v654
    %v832 = vunpack.c.h.b16 %v654
    %v833 = vunpack.c.l.b16 %v655
    %v834 = vunpack.c.h.b16 %v655
    %v835 = vunpack.c.l.b16 %v656
    %v836 = vunpack.c.h.b16 %v656
    %v837 = vunpack.c.l.b16 %v657
    %v838 = vunpack.c.h.b16 %v657
    %v839 = vunpack.c.l.b16 %v658
    %v840 = vunpack.c.h.b16 %v658
    %v841 = vunpack.c.l.b16 %v659
    %v842 = vunpack.c.h.b16 %v659
    %v843 = vunpack.c.l.b16 %v660
    %v844 = vunpack.c.h.b16 %v660
    %v845 = vunpack.c.l.b16 %v661
    %v846 = vunpack.c.h.b16 %v661
    %v847 = vunpack.c.l.b16 %v662
    %v848 = vunpack.c.h.b16 %v662
    %v849 = vunpack.c.l.b16 %v663
    %v850 = vunpack.c.h.b16 %v663
    %v851 = vunpack.c.l.b16 %v664
    %v852 = vunpack.c.h.b16 %v664
    %v853 = vunpack.c.l.b16 %v665
    %v854 = vunpack.c.h.b16 %v665
    %v855 = vunpack.c.l.b16 %v666
    %v856 = vunpack.c.h.b16 %v666
    %v857 = vunpack.c.l.b16 %v667
    %v858 = vunpack.c.h.b16 %v667
    %v859 = vunpack.c.l.b16 %v668
    %v860 = vunpack.c.h.b16 %v668
    %v861 = vunpack.c.l.b16 %v669
    %v862 = vunpack.c.h.b16 %v669
    %v863 = vunpack.c.l.b16 %v670
    %v864 = vunpack.c.h.b16 %v670
    %v865 = vunpack.c.l.b16 %v671
    %v866 = vunpack.c.h.b16 %v671
    %v867 = vunpack.c.l.b16 %v672
    %v868 = vunpack.c.h.b16 %v672
    %v869 = vunpack.c.l.b16 %v673
    %v870 = vunpack.c.h.b16 %v673
    %v871 = vunpack.c.l.b16 %v674
    %v872 = vunpack.c.h.b16 %v674
    %v873 = vunpack.c.l.b16 %v675
    %v874 = vunpack.c.h.b16 %v675
    %v875 = vunpack.c.l.b16 %v676
    %v876 = vunpack.c.h.b16 %v676
    %v877 = vunpack.c.l.b16 %v677
    %v878 = vunpack.c.h.b16 %v677
    %v879 = vunpack.c.l.b16 %v678
    %v880 = vunpack.c.h.b16 %v678
    %v881 = vunpack.c.l.b16 %v679
    %v882 = vunpack.c.h.b16 %v679
    %v883 = vunpack.c.l.b16 %v680
    %v884 = vunpack.c.h.b16 %v680
    %v885 = vunpack.c.l.b16 %v681
    %v886 = vunpack.c.h.b16 %v681
    %v887 = vunpack.c.l.b16 %v682
    %v888 = vunpack.c.h.b16 %v682
    %v889 = vunpack.c.l.b16 %v683
    %v890 = vunpack.c.h.b16 %v683
    %v891 = vunpack.c.l.b16 %v684
    %v892 = vunpack.c.h.b16 %v684
    %v893 = vunpack.c.l.b16 %v685
    %v894 = vunpack.c.h.b16 %v685
    %v895 = vunpack.c.l.b16 %v686
    %v896 = vunpack.c.h.b16 %v686
    %v897 = vunpack.c.l.b16 %v687
    %v898 = vunpack.c.h.b16 %v687
    %v899 = vunpack.c.l.b16 %v688
    %v900 = vunpack.c.h.b16 %v688
    %v901 = vunpack.c.l.b16 %v689
    %v902 = vunpack.c.h.b16 %v689
    %v903 = vunpack.c.l.b16 %v690
    %v904 = vunpack.c.h.b16 %v690
    %v905 = vpack.c.b16 %v781, %v777
    %v906 = vpack.c.b16 %v782, %v778
    %v907 = vpack.c.b16 %v783, %v779
    %v908 = vpack.c.b16 %v784, %v780
    %v909 = vpack.c.b16 %v789, %v785
    %v910 = vpack.c.b16 %v790, %v786
    %v911 = vpack.c.b16 %v791, %v787
    %v912 = vpack.c.b16 %v792, %v788
    %v913 = vpack.c.b16 %v797, %v793
    %v914 = vpack.c.b16 %v798, %v794
    %v915 = vpack.c.b16 %v799, %v795
    %v916 = vpack.c.b16 %v800, %v796
    %v917 = vpack.c.b16 %v805, %v801
    %v918 = vpack.c.b16 %v806, %v802
    %v919 = vpack.c.b16 %v807, %v803
    %v920 = vpack.c.b16 %v808, %v804
    %v921 = vpack.c.b16 %v813, %v809
    %v922 = vpack.c.b16 %v814, %v810
    %v923 = vpack.c.b16 %v815, %v811
    %v924 = vpack.c.b16 %v816, %v812
    %v925 = vpack.c.b16 %v821, %v817
    %v926 = vpack.c.b16 %v822, %v818
    %v927 = vpack.c.b16 %v823, %v819
    %v928 = vpack.c.b16 %v824, %v820
    %v929 = vpack.c.b16 %v829, %v825
    %v930 = vpack.c.b16 %v830, %v826
    %v931 = vpack.c.b16 %v831, %v827
    %v932 = vpack.c.b16 %v832, %v828
    %v933 = vpack.c.b16 %v837, %v833
    %v934 = vpack.c.b16 %v838, %v834
    %v935 = vpack.c.b16 %v839, %v835
    %v936 = vpack.c.b16 %v840, %v836
    %v937 = vpack.c.b16 %v845, %v841
    %v938 = vpack.c.b16 %v846, %v842
    %v939 = vpack.c.b16 %v847, %v843
    %v940 = vpack.c.b16 %v848, %v844
    %v941 = vpack.c.b16 %v853, %v849
    %v942 = vpack.c.b16 %v854, %v850
    %v943 = vpack.c.b16 %v855, %v851
    %v944 = vpack.c.b16 %v856, %v852
    %v945 = vpack.c.b16 %v861, %v857
    %v946 = vpack.c.b16 %v862, %v858
    %v947 = vpack.c.b16 %v863, %v859
    %v948 = vpack.c.b16 %v864, %v860
    %v949 = vpack.c.b16 %v869, %v865
    %v950 = vpack.c.b16 %v870, %v866
    %v951 = vpack.c.b16 %v871, %v867
    %v952 = vpack.c.b16 %v872, %v868
    %v953 = vpack.c.b16 %v877, %v873
    %v954 = vpack.c.b16 %v878, %v874
    %v955 = vpack.c.b16 %v879, %v875
    %v956 = vpack.c.b16 %v880, %v876
    %v957 = vpack.c.b16 %v885, %v881
    %v958 = vpack.c.b16 %v886, %v882
    %v959 = vpack.c.b16 %v887, %v883
    %v960 = vpack.c.b16 %v888, %v884
    %v961 = vpack.c.b16 %v893, %v889
    %v962 = vpack.c.b16 %v894, %v890
    %v963 = vpack.c.b16 %v895, %v891
    %v964 = vpack.c.b16 %v896, %v892
    %v965 = vpack.c.b16 %v901, %v897
    %v966 = vpack.c.b16 %v902, %v898
    %v967 = vpack.c.b16 %v903, %v899
    %v968 = vpack.c.b16 %v904, %v900
    %1033 = vmatprep.subr.bf16.mxu0 %v906
    %1034 = vmatpush1.bf16.msra.mxu0 %v905
    %1035 = vmatprep.subr.bf16.mxu0 %v910
    %1036 = vmatpush1.bf16.msra.mxu0 %v909
    %1037 = vmatprep.subr.bf16.mxu0 %v914
    %1038 = vmatpush1.bf16.msra.mxu0 %v913
    %1039 = vmatprep.subr.bf16.mxu0 %v918
    %1040 = vmatpush1.bf16.msra.mxu0 %v917
    %1041 = vmatprep.subr.bf16.mxu0 %v922
    %1042 = vmatpush1.bf16.msra.mxu0 %v921
    %1043 = vmatprep.subr.bf16.mxu0 %v926
    %1044 = vmatpush1.bf16.msra.mxu0 %v925
    %1045 = vmatprep.subr.bf16.mxu0 %v930
    %1046 = vmatpush1.bf16.msra.mxu0 %v929
    %1047 = vmatprep.subr.bf16.mxu0 %v934
    %1048 = vmatpush1.bf16.msra.mxu0 %v933
    %1049 = vmatprep.subr.bf16.mxu0 %v938
    %1050 = vmatpush1.bf16.msra.mxu0 %v937
    %1051 = vmatprep.subr.bf16.mxu0 %v942
    %1052 = vmatpush1.bf16.msra.mxu0 %v941
    %1053 = vmatprep.subr.bf16.mxu0 %v946
    %1054 = vmatpush1.bf16.msra.mxu0 %v945
    %1055 = vmatprep.subr.bf16.mxu0 %v950
    %1056 = vmatpush1.bf16.msra.mxu0 %v949
    %1057 = vmatprep.subr.bf16.mxu0 %v954
    %1058 = vmatpush1.bf16.msra.mxu0 %v953
    %1059 = vmatprep.subr.bf16.mxu0 %v958
    %1060 = vmatpush1.bf16.msra.mxu0 %v957
    %1061 = vmatprep.subr.bf16.mxu0 %v962
    %1062 = vmatpush1.bf16.msra.mxu0 %v961
    %1063 = vmatprep.subr.bf16.mxu0 %v966
    %1064 = vmatpush1.bf16.msra.mxu0 %v965
    %1065 = vmatprep.mubr.bf16.mxu0 %v626
    %1066 = vmatmul.mubr.bf16.gmra.mrb[0].mxu0 %v625
    %v1067 = vpop.f32.mrb[0].mxu0
    %v1068 = vadd.f32 %v696, %v1067
    %v1069 = vpop.f32.mrb[0].mxu0
    %v1070 = vadd.f32 %v700, %v1069
    %v1071 = vpop.f32.mrb[0].mxu0
    %v1072 = vadd.f32 %v696, %v1071
    %v1073 = vpop.f32.mrb[0].mxu0
    %v1074 = vadd.f32 %v700, %v1073
    %1075 = vdwg.mxu0
    %1076 = vmatprep.subr.bf16.mxu0 %v908
    %1077 = vmatpush1.bf16.msra.mxu0 %v907
    %1078 = vmatprep.subr.bf16.mxu0 %v912
    %1079 = vmatpush1.bf16.msra.mxu0 %v911
    %1080 = vmatprep.subr.bf16.mxu0 %v916
    %1081 = vmatpush1.bf16.msra.mxu0 %v915
    %1082 = vmatprep.subr.bf16.mxu0 %v920
    %1083 = vmatpush1.bf16.msra.mxu0 %v919
    %1084 = vmatprep.subr.bf16.mxu0 %v924
    %1085 = vmatpush1.bf16.msra.mxu0 %v923
    %1086 = vmatprep.subr.bf16.mxu0 %v928
    %1087 = vmatpush1.bf16.msra.mxu0 %v927
    %1088 = vmatprep.subr.bf16.mxu0 %v932
    %1089 = vmatpush1.bf16.msra.mxu0 %v931
    %1090 = vmatprep.subr.bf16.mxu0 %v936
    %1091 = vmatpush1.bf16.msra.mxu0 %v935
    %1092 = vmatprep.subr.bf16.mxu0 %v940
    %1093 = vmatpush1.bf16.msra.mxu0 %v939
    %1094 = vmatprep.subr.bf16.mxu0 %v944
    %1095 = vmatpush1.bf16.msra.mxu0 %v943
    %1096 = vmatprep.subr.bf16.mxu0 %v948
    %1097 = vmatpush1.bf16.msra.mxu0 %v947
    %1098 = vmatprep.subr.bf16.mxu0 %v952
    %1099 = vmatpush1.bf16.msra.mxu0 %v951
    %1100 = vmatprep.subr.bf16.mxu0 %v956
    %1101 = vmatpush1.bf16.msra.mxu0 %v955
    %1102 = vmatprep.subr.bf16.mxu0 %v960
    %1103 = vmatpush1.bf16.msra.mxu0 %v959
    %1104 = vmatprep.subr.bf16.mxu0 %v964
    %1105 = vmatpush1.bf16.msra.mxu0 %v963
    %1106 = vmatprep.subr.bf16.mxu0 %v968
    %1107 = vmatpush1.bf16.msra.mxu0 %v967
    %1108 = vmatprep.mubr.bf16.mxu0 %v626
    %1109 = vmatmul.mubr.bf16.gmra.mrb[0].mxu0 %v625
    %v1110 = vpop.f32.mrb[0].mxu0
    %v1111 = vadd.f32 %v704, %v1110
    %v1112 = vpop.f32.mrb[0].mxu0
    %v1113 = vadd.f32 %v708, %v1112
    %v1114 = vpop.f32.mrb[0].mxu0
    %v1115 = vadd.f32 %v704, %v1114
    %v1116 = vpop.f32.mrb[0].mxu0
    %v1117 = vadd.f32 %v708, %v1116
    %1118 = vdwg.mxu0
    %vm1119 = vcmp.gt.f32.partialorder %v1068, 0.0
    %vm1120 = vcmp.gt.f32.partialorder %v1070, 0.0
    %vm1121 = vcmp.gt.f32.partialorder %v1111, 0.0
    %vm1122 = vcmp.gt.f32.partialorder %v1113, 0.0
    %vm1123 = vcmp.gt.f32.partialorder %v1072, 0.0
    %vm1124 = vcmp.gt.f32.partialorder %v1074, 0.0
    %vm1125 = vcmp.gt.f32.partialorder %v1115, 0.0
    %vm1126 = vcmp.gt.f32.partialorder %v1117, 0.0
    %v1127 = vmul.f32 %v1068, 0.01
    %v1128 = vmul.f32 %v1070, 0.01
    %v1129 = vmul.f32 %v1111, 0.01
    %v1130 = vmul.f32 %v1113, 0.01
    %v1131 = vmul.f32 %v1072, 0.01
    %v1132 = vmul.f32 %v1074, 0.01
    %v1133 = vmul.f32 %v1115, 0.01
    %v1134 = vmul.f32 %v1117, 0.01
    %v1135 = vsel %vm1119, %v1068, %v1127
    %v1136 = vsel %vm1120, %v1070, %v1128
    %v1137 = vsel %vm1121, %v1111, %v1129
    %v1138 = vsel %vm1122, %v1113, %v1130
    %v1139 = vsel %vm1123, %v1072, %v1131
    %v1140 = vsel %vm1124, %v1074, %v1132
    %v1141 = vsel %vm1125, %v1115, %v1133
    %v1142 = vsel %vm1126, %v1117, %v1134
    %v1143 = vpack.c.bf16 %v1139, %v1135
    %v1144 = vpack.c.bf16 %v1140, %v1136
    %v1145 = vpack.c.bf16 %v1141, %v1137
    %v1146 = vpack.c.bf16 %v1142, %v1138
    %v1147 = vld [vmem:[#allocation6] sm:$0xff]
    %v1148 = vld [vmem:[#allocation6 + $0x8] sm:$0xff]
    %v1149 = vld [vmem:[#allocation6 + $0x10] sm:$0xff]
    %v1150 = vld [vmem:[#allocation6 + $0x18] sm:$0xff]
    %v1151 = vld [vmem:[#allocation6 + $0x20] sm:$0xff]
    %v1152 = vld [vmem:[#allocation6 + $0x28] sm:$0xff]
    %v1153 = vld [vmem:[#allocation6 + $0x30] sm:$0xff]
    %v1154 = vld [vmem:[#allocation6 + $0x38] sm:$0xff]
    %v1155 = vld [vmem:[#allocation6 + $0x40] sm:$0xff]
    %v1156 = vld [vmem:[#allocation6 + $0x48] sm:$0xff]
    %v1157 = vld [vmem:[#allocation6 + $0x50] sm:$0xff]
    %v1158 = vld [vmem:[#allocation6 + $0x58] sm:$0xff]
    %v1159 = vld [vmem:[#allocation6 + $0x60] sm:$0xff]
    %v1160 = vld [vmem:[#allocation6 + $0x68] sm:$0xff]
    %v1161 = vld [vmem:[#allocation6 + $0x70] sm:$0xff]
    %v1162 = vld [vmem:[#allocation6 + $0x78] sm:$0xff]
    %v1163 = vld [vmem:[#allocation6 + $0x80] sm:$0xff]
    %v1164 = vld [vmem:[#allocation6 + $0x88] sm:$0xff]
    %v1165 = vld [vmem:[#allocation6 + $0x90] sm:$0xff]
    %v1166 = vld [vmem:[#allocation6 + $0x98] sm:$0xff]
    %v1167 = vld [vmem:[#allocation6 + $0xa0] sm:$0xff]
    %v1168 = vld [vmem:[#allocation6 + $0xa8] sm:$0xff]
    %v1169 = vld [vmem:[#allocation6 + $0xb0] sm:$0xff]
    %v1170 = vld [vmem:[#allocation6 + $0xb8] sm:$0xff]
    %v1171 = vld [vmem:[#allocation6 + $0xc0] sm:$0xff]
    %v1172 = vld [vmem:[#allocation6 + $0xc8] sm:$0xff]
    %v1173 = vld [vmem:[#allocation6 + $0xd0] sm:$0xff]
    %v1174 = vld [vmem:[#allocation6 + $0xd8] sm:$0xff]
    %v1175 = vld [vmem:[#allocation6 + $0xe0] sm:$0xff]
    %v1176 = vld [vmem:[#allocation6 + $0xe8] sm:$0xff]
    %v1177 = vld [vmem:[#allocation6 + $0xf0] sm:$0xff]
    %v1178 = vld [vmem:[#allocation6 + $0xf8] sm:$0xff]
    %v1179 = vld [vmem:[#allocation6 + $0x100] sm:$0xff]
    %v1180 = vld [vmem:[#allocation6 + $0x108] sm:$0xff]
    %v1181 = vld [vmem:[#allocation6 + $0x110] sm:$0xff]
    %v1182 = vld [vmem:[#allocation6 + $0x118] sm:$0xff]
    %v1183 = vld [vmem:[#allocation6 + $0x120] sm:$0xff]
    %v1184 = vld [vmem:[#allocation6 + $0x128] sm:$0xff]
    %v1185 = vld [vmem:[#allocation6 + $0x130] sm:$0xff]
    %v1186 = vld [vmem:[#allocation6 + $0x138] sm:$0xff]
    %v1187 = vld [vmem:[#allocation6 + $0x140] sm:$0xff]
    %v1188 = vld [vmem:[#allocation6 + $0x148] sm:$0xff]
    %v1189 = vld [vmem:[#allocation6 + $0x150] sm:$0xff]
    %v1190 = vld [vmem:[#allocation6 + $0x158] sm:$0xff]
    %v1191 = vld [vmem:[#allocation6 + $0x160] sm:$0xff]
    %v1192 = vld [vmem:[#allocation6 + $0x168] sm:$0xff]
    %v1193 = vld [vmem:[#allocation6 + $0x170] sm:$0xff]
    %v1194 = vld [vmem:[#allocation6 + $0x178] sm:$0xff]
    %v1195 = vld [vmem:[#allocation6 + $0x180] sm:$0xff]
    %v1196 = vld [vmem:[#allocation6 + $0x188] sm:$0xff]
    %v1197 = vld [vmem:[#allocation6 + $0x190] sm:$0xff]
    %v1198 = vld [vmem:[#allocation6 + $0x198] sm:$0xff]
    %v1199 = vld [vmem:[#allocation6 + $0x1a0] sm:$0xff]
    %v1200 = vld [vmem:[#allocation6 + $0x1a8] sm:$0xff]
    %v1201 = vld [vmem:[#allocation6 + $0x1b0] sm:$0xff]
    %v1202 = vld [vmem:[#allocation6 + $0x1b8] sm:$0xff]
    %v1203 = vld [vmem:[#allocation6 + $0x1c0] sm:$0xff]
    %v1204 = vld [vmem:[#allocation6 + $0x1c8] sm:$0xff]
    %v1205 = vld [vmem:[#allocation6 + $0x1d0] sm:$0xff]
    %v1206 = vld [vmem:[#allocation6 + $0x1d8] sm:$0xff]
    %v1207 = vld [vmem:[#allocation6 + $0x1e0] sm:$0xff]
    %v1208 = vld [vmem:[#allocation6 + $0x1e8] sm:$0xff]
    %v1209 = vld [vmem:[#allocation6 + $0x1f0] sm:$0xff]
    %v1210 = vld [vmem:[#allocation6 + $0x1f8] sm:$0xff]
    %v1211 = vld [vmem:[#allocation6 + $0x200] sm:$0xff]
    %v1212 = vld [vmem:[#allocation6 + $0x208] sm:$0xff]
    %v1213 = vld [vmem:[#allocation6 + $0x210] sm:$0xff]
    %v1214 = vld [vmem:[#allocation6 + $0x218] sm:$0xff]
    %v1215 = vld [vmem:[#allocation6 + $0x220] sm:$0xff]
    %v1216 = vld [vmem:[#allocation6 + $0x228] sm:$0xff]
    %v1217 = vld [vmem:[#allocation6 + $0x230] sm:$0xff]
    %v1218 = vld [vmem:[#allocation6 + $0x238] sm:$0xff]
    %v1219 = vld [vmem:[#allocation6 + $0x240] sm:$0xff]
    %v1220 = vld [vmem:[#allocation6 + $0x248] sm:$0xff]
    %v1221 = vld [vmem:[#allocation6 + $0x250] sm:$0xff]
    %v1222 = vld [vmem:[#allocation6 + $0x258] sm:$0xff]
    %v1223 = vld [vmem:[#allocation6 + $0x260] sm:$0xff]
    %v1224 = vld [vmem:[#allocation6 + $0x268] sm:$0xff]
    %v1225 = vld [vmem:[#allocation6 + $0x270] sm:$0xff]
    %v1226 = vld [vmem:[#allocation6 + $0x278] sm:$0xff]
    %v1227 = vld [vmem:[#allocation6 + $0x280] sm:$0xff]
    %v1228 = vld [vmem:[#allocation6 + $0x288] sm:$0xff]
    %v1229 = vld [vmem:[#allocation6 + $0x290] sm:$0xff]
    %v1230 = vld [vmem:[#allocation6 + $0x298] sm:$0xff]
    %v1231 = vld [vmem:[#allocation6 + $0x2a0] sm:$0xff]
    %v1232 = vld [vmem:[#allocation6 + $0x2a8] sm:$0xff]
    %v1233 = vld [vmem:[#allocation6 + $0x2b0] sm:$0xff]
    %v1234 = vld [vmem:[#allocation6 + $0x2b8] sm:$0xff]
    %v1235 = vld [vmem:[#allocation6 + $0x2c0] sm:$0xff]
    %v1236 = vld [vmem:[#allocation6 + $0x2c8] sm:$0xff]
    %v1237 = vld [vmem:[#allocation6 + $0x2d0] sm:$0xff]
    %v1238 = vld [vmem:[#allocation6 + $0x2d8] sm:$0xff]
    %v1239 = vld [vmem:[#allocation6 + $0x2e0] sm:$0xff]
    %v1240 = vld [vmem:[#allocation6 + $0x2e8] sm:$0xff]
    %v1241 = vld [vmem:[#allocation6 + $0x2f0] sm:$0xff]
    %v1242 = vld [vmem:[#allocation6 + $0x2f8] sm:$0xff]
    %v1243 = vld [vmem:[#allocation6 + $0x300] sm:$0xff]
    %v1244 = vld [vmem:[#allocation6 + $0x308] sm:$0xff]
    %v1245 = vld [vmem:[#allocation6 + $0x310] sm:$0xff]
    %v1246 = vld [vmem:[#allocation6 + $0x318] sm:$0xff]
    %v1247 = vld [vmem:[#allocation6 + $0x320] sm:$0xff]
    %v1248 = vld [vmem:[#allocation6 + $0x328] sm:$0xff]
    %v1249 = vld [vmem:[#allocation6 + $0x330] sm:$0xff]
    %v1250 = vld [vmem:[#allocation6 + $0x338] sm:$0xff]
    %v1251 = vld [vmem:[#allocation6 + $0x340] sm:$0xff]
    %v1252 = vld [vmem:[#allocation6 + $0x348] sm:$0xff]
    %v1253 = vld [vmem:[#allocation6 + $0x350] sm:$0xff]
    %v1254 = vld [vmem:[#allocation6 + $0x358] sm:$0xff]
    %v1255 = vld [vmem:[#allocation6 + $0x360] sm:$0xff]
    %v1256 = vld [vmem:[#allocation6 + $0x368] sm:$0xff]
    %v1257 = vld [vmem:[#allocation6 + $0x370] sm:$0xff]
    %v1258 = vld [vmem:[#allocation6 + $0x378] sm:$0xff]
    %v1259 = vld [vmem:[#allocation6 + $0x380] sm:$0xff]
    %v1260 = vld [vmem:[#allocation6 + $0x388] sm:$0xff]
    %v1261 = vld [vmem:[#allocation6 + $0x390] sm:$0xff]
    %v1262 = vld [vmem:[#allocation6 + $0x398] sm:$0xff]
    %v1263 = vld [vmem:[#allocation6 + $0x3a0] sm:$0xff]
    %v1264 = vld [vmem:[#allocation6 + $0x3a8] sm:$0xff]
    %v1265 = vld [vmem:[#allocation6 + $0x3b0] sm:$0xff]
    %v1266 = vld [vmem:[#allocation6 + $0x3b8] sm:$0xff]
    %v1267 = vld [vmem:[#allocation6 + $0x3c0] sm:$0xff]
    %v1268 = vld [vmem:[#allocation6 + $0x3c8] sm:$0xff]
    %v1269 = vld [vmem:[#allocation6 + $0x3d0] sm:$0xff]
    %v1270 = vld [vmem:[#allocation6 + $0x3d8] sm:$0xff]
    %v1271 = vld [vmem:[#allocation6 + $0x3e0] sm:$0xff]
    %v1272 = vld [vmem:[#allocation6 + $0x3e8] sm:$0xff]
    %v1273 = vld [vmem:[#allocation6 + $0x3f0] sm:$0xff]
    %v1274 = vld [vmem:[#allocation6 + $0x3f8] sm:$0xff]
    %v1275 = vld [vmem:[%s6] sm:$0xf]
    %v1277 = vlaneseq
    %v1278 = vshrl.u32 %v1277, 7
    %v1279 = vsub.s32 0, %v1278
    %v1280 = vrot.slane %v1275, %v1279
    %v1281 = vlaneseq
    %v1282 = vshrl.u32 %v1281, 7
    %v1283 = vsub.s32 1, %v1282
    %v1284 = vrot.slane %v1275, %v1283
    %v1285 = vlaneseq
    %v1286 = vshrl.u32 %v1285, 7
    %v1287 = vsub.s32 2, %v1286
    %v1288 = vrot.slane %v1275, %v1287
    %v1289 = vlaneseq
    %v1290 = vshrl.u32 %v1289, 7
    %v1291 = vsub.s32 3, %v1290
    %v1292 = vrot.slane %v1275, %v1291
    %v1425 = vunpack.c.l.b16 %v1147
    %v1426 = vunpack.c.h.b16 %v1147
    %v1427 = vunpack.c.l.b16 %v1148
    %v1428 = vunpack.c.h.b16 %v1148
    %v1429 = vunpack.c.l.b16 %v1149
    %v1430 = vunpack.c.h.b16 %v1149
    %v1431 = vunpack.c.l.b16 %v1150
    %v1432 = vunpack.c.h.b16 %v1150
    %v1433 = vunpack.c.l.b16 %v1151
    %v1434 = vunpack.c.h.b16 %v1151
    %v1435 = vunpack.c.l.b16 %v1152
    %v1436 = vunpack.c.h.b16 %v1152
    %v1437 = vunpack.c.l.b16 %v1153
    %v1438 = vunpack.c.h.b16 %v1153
    %v1439 = vunpack.c.l.b16 %v1154
    %v1440 = vunpack.c.h.b16 %v1154
    %v1441 = vunpack.c.l.b16 %v1155
    %v1442 = vunpack.c.h.b16 %v1155
    %v1443 = vunpack.c.l.b16 %v1156
    %v1444 = vunpack.c.h.b16 %v1156
    %v1445 = vunpack.c.l.b16 %v1157
    %v1446 = vunpack.c.h.b16 %v1157
    %v1447 = vunpack.c.l.b16 %v1158
    %v1448 = vunpack.c.h.b16 %v1158
    %v1449 = vunpack.c.l.b16 %v1159
    %v1450 = vunpack.c.h.b16 %v1159
    %v1451 = vunpack.c.l.b16 %v1160
    %v1452 = vunpack.c.h.b16 %v1160
    %v1453 = vunpack.c.l.b16 %v1161
    %v1454 = vunpack.c.h.b16 %v1161
    %v1455 = vunpack.c.l.b16 %v1162
    %v1456 = vunpack.c.h.b16 %v1162
    %v1457 = vunpack.c.l.b16 %v1163
    %v1458 = vunpack.c.h.b16 %v1163
    %v1459 = vunpack.c.l.b16 %v1164
    %v1460 = vunpack.c.h.b16 %v1164
    %v1461 = vunpack.c.l.b16 %v1165
    %v1462 = vunpack.c.h.b16 %v1165
    %v1463 = vunpack.c.l.b16 %v1166
    %v1464 = vunpack.c.h.b16 %v1166
    %v1465 = vunpack.c.l.b16 %v1167
    %v1466 = vunpack.c.h.b16 %v1167
    %v1467 = vunpack.c.l.b16 %v1168
    %v1468 = vunpack.c.h.b16 %v1168
    %v1469 = vunpack.c.l.b16 %v1169
    %v1470 = vunpack.c.h.b16 %v1169
    %v1471 = vunpack.c.l.b16 %v1170
    %v1472 = vunpack.c.h.b16 %v1170
    %v1473 = vunpack.c.l.b16 %v1171
    %v1474 = vunpack.c.h.b16 %v1171
    %v1475 = vunpack.c.l.b16 %v1172
    %v1476 = vunpack.c.h.b16 %v1172
    %v1477 = vunpack.c.l.b16 %v1173
    %v1478 = vunpack.c.h.b16 %v1173
    %v1479 = vunpack.c.l.b16 %v1174
    %v1480 = vunpack.c.h.b16 %v1174
    %v1481 = vunpack.c.l.b16 %v1175
    %v1482 = vunpack.c.h.b16 %v1175
    %v1483 = vunpack.c.l.b16 %v1176
    %v1484 = vunpack.c.h.b16 %v1176
    %v1485 = vunpack.c.l.b16 %v1177
    %v1486 = vunpack.c.h.b16 %v1177
    %v1487 = vunpack.c.l.b16 %v1178
    %v1488 = vunpack.c.h.b16 %v1178
    %v1489 = vunpack.c.l.b16 %v1179
    %v1490 = vunpack.c.h.b16 %v1179
    %v1491 = vunpack.c.l.b16 %v1180
    %v1492 = vunpack.c.h.b16 %v1180
    %v1493 = vunpack.c.l.b16 %v1181
    %v1494 = vunpack.c.h.b16 %v1181
    %v1495 = vunpack.c.l.b16 %v1182
    %v1496 = vunpack.c.h.b16 %v1182
    %v1497 = vunpack.c.l.b16 %v1183
    %v1498 = vunpack.c.h.b16 %v1183
    %v1499 = vunpack.c.l.b16 %v1184
    %v1500 = vunpack.c.h.b16 %v1184
    %v1501 = vunpack.c.l.b16 %v1185
    %v1502 = vunpack.c.h.b16 %v1185
    %v1503 = vunpack.c.l.b16 %v1186
    %v1504 = vunpack.c.h.b16 %v1186
    %v1505 = vunpack.c.l.b16 %v1187
    %v1506 = vunpack.c.h.b16 %v1187
    %v1507 = vunpack.c.l.b16 %v1188
    %v1508 = vunpack.c.h.b16 %v1188
    %v1509 = vunpack.c.l.b16 %v1189
    %v1510 = vunpack.c.h.b16 %v1189
    %v1511 = vunpack.c.l.b16 %v1190
    %v1512 = vunpack.c.h.b16 %v1190
    %v1513 = vunpack.c.l.b16 %v1191
    %v1514 = vunpack.c.h.b16 %v1191
    %v1515 = vunpack.c.l.b16 %v1192
    %v1516 = vunpack.c.h.b16 %v1192
    %v1517 = vunpack.c.l.b16 %v1193
    %v1518 = vunpack.c.h.b16 %v1193
    %v1519 = vunpack.c.l.b16 %v1194
    %v1520 = vunpack.c.h.b16 %v1194
    %v1521 = vunpack.c.l.b16 %v1195
    %v1522 = vunpack.c.h.b16 %v1195
    %v1523 = vunpack.c.l.b16 %v1196
    %v1524 = vunpack.c.h.b16 %v1196
    %v1525 = vunpack.c.l.b16 %v1197
    %v1526 = vunpack.c.h.b16 %v1197
    %v1527 = vunpack.c.l.b16 %v1198
    %v1528 = vunpack.c.h.b16 %v1198
    %v1529 = vunpack.c.l.b16 %v1199
    %v1530 = vunpack.c.h.b16 %v1199
    %v1531 = vunpack.c.l.b16 %v1200
    %v1532 = vunpack.c.h.b16 %v1200
    %v1533 = vunpack.c.l.b16 %v1201
    %v1534 = vunpack.c.h.b16 %v1201
    %v1535 = vunpack.c.l.b16 %v1202
    %v1536 = vunpack.c.h.b16 %v1202
    %v1537 = vunpack.c.l.b16 %v1203
    %v1538 = vunpack.c.h.b16 %v1203
    %v1539 = vunpack.c.l.b16 %v1204
    %v1540 = vunpack.c.h.b16 %v1204
    %v1541 = vunpack.c.l.b16 %v1205
    %v1542 = vunpack.c.h.b16 %v1205
    %v1543 = vunpack.c.l.b16 %v1206
    %v1544 = vunpack.c.h.b16 %v1206
    %v1545 = vunpack.c.l.b16 %v1207
    %v1546 = vunpack.c.h.b16 %v1207
    %v1547 = vunpack.c.l.b16 %v1208
    %v1548 = vunpack.c.h.b16 %v1208
    %v1549 = vunpack.c.l.b16 %v1209
    %v1550 = vunpack.c.h.b16 %v1209
    %v1551 = vunpack.c.l.b16 %v1210
    %v1552 = vunpack.c.h.b16 %v1210
    %v1553 = vunpack.c.l.b16 %v1211
    %v1554 = vunpack.c.h.b16 %v1211
    %v1555 = vunpack.c.l.b16 %v1212
    %v1556 = vunpack.c.h.b16 %v1212
    %v1557 = vunpack.c.l.b16 %v1213
    %v1558 = vunpack.c.h.b16 %v1213
    %v1559 = vunpack.c.l.b16 %v1214
    %v1560 = vunpack.c.h.b16 %v1214
    %v1561 = vunpack.c.l.b16 %v1215
    %v1562 = vunpack.c.h.b16 %v1215
    %v1563 = vunpack.c.l.b16 %v1216
    %v1564 = vunpack.c.h.b16 %v1216
    %v1565 = vunpack.c.l.b16 %v1217
    %v1566 = vunpack.c.h.b16 %v1217
    %v1567 = vunpack.c.l.b16 %v1218
    %v1568 = vunpack.c.h.b16 %v1218
    %v1569 = vunpack.c.l.b16 %v1219
    %v1570 = vunpack.c.h.b16 %v1219
    %v1571 = vunpack.c.l.b16 %v1220
    %v1572 = vunpack.c.h.b16 %v1220
    %v1573 = vunpack.c.l.b16 %v1221
    %v1574 = vunpack.c.h.b16 %v1221
    %v1575 = vunpack.c.l.b16 %v1222
    %v1576 = vunpack.c.h.b16 %v1222
    %v1577 = vunpack.c.l.b16 %v1223
    %v1578 = vunpack.c.h.b16 %v1223
    %v1579 = vunpack.c.l.b16 %v1224
    %v1580 = vunpack.c.h.b16 %v1224
    %v1581 = vunpack.c.l.b16 %v1225
    %v1582 = vunpack.c.h.b16 %v1225
    %v1583 = vunpack.c.l.b16 %v1226
    %v1584 = vunpack.c.h.b16 %v1226
    %v1585 = vunpack.c.l.b16 %v1227
    %v1586 = vunpack.c.h.b16 %v1227
    %v1587 = vunpack.c.l.b16 %v1228
    %v1588 = vunpack.c.h.b16 %v1228
    %v1589 = vunpack.c.l.b16 %v1229
    %v1590 = vunpack.c.h.b16 %v1229
    %v1591 = vunpack.c.l.b16 %v1230
    %v1592 = vunpack.c.h.b16 %v1230
    %v1593 = vunpack.c.l.b16 %v1231
    %v1594 = vunpack.c.h.b16 %v1231
    %v1595 = vunpack.c.l.b16 %v1232
    %v1596 = vunpack.c.h.b16 %v1232
    %v1597 = vunpack.c.l.b16 %v1233
    %v1598 = vunpack.c.h.b16 %v1233
    %v1599 = vunpack.c.l.b16 %v1234
    %v1600 = vunpack.c.h.b16 %v1234
    %v1601 = vunpack.c.l.b16 %v1235
    %v1602 = vunpack.c.h.b16 %v1235
    %v1603 = vunpack.c.l.b16 %v1236
    %v1604 = vunpack.c.h.b16 %v1236
    %v1605 = vunpack.c.l.b16 %v1237
    %v1606 = vunpack.c.h.b16 %v1237
    %v1607 = vunpack.c.l.b16 %v1238
    %v1608 = vunpack.c.h.b16 %v1238
    %v1609 = vunpack.c.l.b16 %v1239
    %v1610 = vunpack.c.h.b16 %v1239
    %v1611 = vunpack.c.l.b16 %v1240
    %v1612 = vunpack.c.h.b16 %v1240
    %v1613 = vunpack.c.l.b16 %v1241
    %v1614 = vunpack.c.h.b16 %v1241
    %v1615 = vunpack.c.l.b16 %v1242
    %v1616 = vunpack.c.h.b16 %v1242
    %v1617 = vunpack.c.l.b16 %v1243
    %v1618 = vunpack.c.h.b16 %v1243
    %v1619 = vunpack.c.l.b16 %v1244
    %v1620 = vunpack.c.h.b16 %v1244
    %v1621 = vunpack.c.l.b16 %v1245
    %v1622 = vunpack.c.h.b16 %v1245
    %v1623 = vunpack.c.l.b16 %v1246
    %v1624 = vunpack.c.h.b16 %v1246
    %v1625 = vunpack.c.l.b16 %v1247
    %v1626 = vunpack.c.h.b16 %v1247
    %v1627 = vunpack.c.l.b16 %v1248
    %v1628 = vunpack.c.h.b16 %v1248
    %v1629 = vunpack.c.l.b16 %v1249
    %v1630 = vunpack.c.h.b16 %v1249
    %v1631 = vunpack.c.l.b16 %v1250
    %v1632 = vunpack.c.h.b16 %v1250
    %v1633 = vunpack.c.l.b16 %v1251
    %v1634 = vunpack.c.h.b16 %v1251
    %v1635 = vunpack.c.l.b16 %v1252
    %v1636 = vunpack.c.h.b16 %v1252
    %v1637 = vunpack.c.l.b16 %v1253
    %v1638 = vunpack.c.h.b16 %v1253
    %v1639 = vunpack.c.l.b16 %v1254
    %v1640 = vunpack.c.h.b16 %v1254
    %v1641 = vunpack.c.l.b16 %v1255
    %v1642 = vunpack.c.h.b16 %v1255
    %v1643 = vunpack.c.l.b16 %v1256
    %v1644 = vunpack.c.h.b16 %v1256
    %v1645 = vunpack.c.l.b16 %v1257
    %v1646 = vunpack.c.h.b16 %v1257
    %v1647 = vunpack.c.l.b16 %v1258
    %v1648 = vunpack.c.h.b16 %v1258
    %v1649 = vunpack.c.l.b16 %v1259
    %v1650 = vunpack.c.h.b16 %v1259
    %v1651 = vunpack.c.l.b16 %v1260
    %v1652 = vunpack.c.h.b16 %v1260
    %v1653 = vunpack.c.l.b16 %v1261
    %v1654 = vunpack.c.h.b16 %v1261
    %v1655 = vunpack.c.l.b16 %v1262
    %v1656 = vunpack.c.h.b16 %v1262
    %v1657 = vunpack.c.l.b16 %v1263
    %v1658 = vunpack.c.h.b16 %v1263
    %v1659 = vunpack.c.l.b16 %v1264
    %v1660 = vunpack.c.h.b16 %v1264
    %v1661 = vunpack.c.l.b16 %v1265
    %v1662 = vunpack.c.h.b16 %v1265
    %v1663 = vunpack.c.l.b16 %v1266
    %v1664 = vunpack.c.h.b16 %v1266
    %v1665 = vunpack.c.l.b16 %v1267
    %v1666 = vunpack.c.h.b16 %v1267
    %v1667 = vunpack.c.l.b16 %v1268
    %v1668 = vunpack.c.h.b16 %v1268
    %v1669 = vunpack.c.l.b16 %v1269
    %v1670 = vunpack.c.h.b16 %v1269
    %v1671 = vunpack.c.l.b16 %v1270
    %v1672 = vunpack.c.h.b16 %v1270
    %v1673 = vunpack.c.l.b16 %v1271
    %v1674 = vunpack.c.h.b16 %v1271
    %v1675 = vunpack.c.l.b16 %v1272
    %v1676 = vunpack.c.h.b16 %v1272
    %v1677 = vunpack.c.l.b16 %v1273
    %v1678 = vunpack.c.h.b16 %v1273
    %v1679 = vunpack.c.l.b16 %v1274
    %v1680 = vunpack.c.h.b16 %v1274
    %v1681 = vpack.c.b16 %v1429, %v1425
    %v1682 = vpack.c.b16 %v1430, %v1426
    %v1683 = vpack.c.b16 %v1431, %v1427
    %v1684 = vpack.c.b16 %v1432, %v1428
    %v1685 = vpack.c.b16 %v1437, %v1433
    %v1686 = vpack.c.b16 %v1438, %v1434
    %v1687 = vpack.c.b16 %v1439, %v1435
    %v1688 = vpack.c.b16 %v1440, %v1436
    %v1689 = vpack.c.b16 %v1445, %v1441
    %v1690 = vpack.c.b16 %v1446, %v1442
    %v1691 = vpack.c.b16 %v1447, %v1443
    %v1692 = vpack.c.b16 %v1448, %v1444
    %v1693 = vpack.c.b16 %v1453, %v1449
    %v1694 = vpack.c.b16 %v1454, %v1450
    %v1695 = vpack.c.b16 %v1455, %v1451
    %v1696 = vpack.c.b16 %v1456, %v1452
    %v1697 = vpack.c.b16 %v1461, %v1457
    %v1698 = vpack.c.b16 %v1462, %v1458
    %v1699 = vpack.c.b16 %v1463, %v1459
    %v1700 = vpack.c.b16 %v1464, %v1460
    %v1701 = vpack.c.b16 %v1469, %v1465
    %v1702 = vpack.c.b16 %v1470, %v1466
    %v1703 = vpack.c.b16 %v1471, %v1467
    %v1704 = vpack.c.b16 %v1472, %v1468
    %v1705 = vpack.c.b16 %v1477, %v1473
    %v1706 = vpack.c.b16 %v1478, %v1474
    %v1707 = vpack.c.b16 %v1479, %v1475
    %v1708 = vpack.c.b16 %v1480, %v1476
    %v1709 = vpack.c.b16 %v1485, %v1481
    %v1710 = vpack.c.b16 %v1486, %v1482
    %v1711 = vpack.c.b16 %v1487, %v1483
    %v1712 = vpack.c.b16 %v1488, %v1484
    %v1713 = vpack.c.b16 %v1493, %v1489
    %v1714 = vpack.c.b16 %v1494, %v1490
    %v1715 = vpack.c.b16 %v1495, %v1491
    %v1716 = vpack.c.b16 %v1496, %v1492
    %v1717 = vpack.c.b16 %v1501, %v1497
    %v1718 = vpack.c.b16 %v1502, %v1498
    %v1719 = vpack.c.b16 %v1503, %v1499
    %v1720 = vpack.c.b16 %v1504, %v1500
    %v1721 = vpack.c.b16 %v1509, %v1505
    %v1722 = vpack.c.b16 %v1510, %v1506
    %v1723 = vpack.c.b16 %v1511, %v1507
    %v1724 = vpack.c.b16 %v1512, %v1508
    %v1725 = vpack.c.b16 %v1517, %v1513
    %v1726 = vpack.c.b16 %v1518, %v1514
    %v1727 = vpack.c.b16 %v1519, %v1515
    %v1728 = vpack.c.b16 %v1520, %v1516
    %v1729 = vpack.c.b16 %v1525, %v1521
    %v1730 = vpack.c.b16 %v1526, %v1522
    %v1731 = vpack.c.b16 %v1527, %v1523
    %v1732 = vpack.c.b16 %v1528, %v1524
    %v1733 = vpack.c.b16 %v1533, %v1529
    %v1734 = vpack.c.b16 %v1534, %v1530
    %v1735 = vpack.c.b16 %v1535, %v1531
    %v1736 = vpack.c.b16 %v1536, %v1532
    %v1737 = vpack.c.b16 %v1541, %v1537
    %v1738 = vpack.c.b16 %v1542, %v1538
    %v1739 = vpack.c.b16 %v1543, %v1539
    %v1740 = vpack.c.b16 %v1544, %v1540
    %v1741 = vpack.c.b16 %v1549, %v1545
    %v1742 = vpack.c.b16 %v1550, %v1546
    %v1743 = vpack.c.b16 %v1551, %v1547
    %v1744 = vpack.c.b16 %v1552, %v1548
    %v1745 = vpack.c.b16 %v1557, %v1553
    %v1746 = vpack.c.b16 %v1558, %v1554
    %v1747 = vpack.c.b16 %v1559, %v1555
    %v1748 = vpack.c.b16 %v1560, %v1556
    %v1749 = vpack.c.b16 %v1565, %v1561
    %v1750 = vpack.c.b16 %v1566, %v1562
    %v1751 = vpack.c.b16 %v1567, %v1563
    %v1752 = vpack.c.b16 %v1568, %v1564
    %v1753 = vpack.c.b16 %v1573, %v1569
    %v1754 = vpack.c.b16 %v1574, %v1570
    %v1755 = vpack.c.b16 %v1575, %v1571
    %v1756 = vpack.c.b16 %v1576, %v1572
    %v1757 = vpack.c.b16 %v1581, %v1577
    %v1758 = vpack.c.b16 %v1582, %v1578
    %v1759 = vpack.c.b16 %v1583, %v1579
    %v1760 = vpack.c.b16 %v1584, %v1580
    %v1761 = vpack.c.b16 %v1589, %v1585
    %v1762 = vpack.c.b16 %v1590, %v1586
    %v1763 = vpack.c.b16 %v1591, %v1587
    %v1764 = vpack.c.b16 %v1592, %v1588
    %v1765 = vpack.c.b16 %v1597, %v1593
    %v1766 = vpack.c.b16 %v1598, %v1594
    %v1767 = vpack.c.b16 %v1599, %v1595
    %v1768 = vpack.c.b16 %v1600, %v1596
    %v1769 = vpack.c.b16 %v1605, %v1601
    %v1770 = vpack.c.b16 %v1606, %v1602
    %v1771 = vpack.c.b16 %v1607, %v1603
    %v1772 = vpack.c.b16 %v1608, %v1604
    %v1773 = vpack.c.b16 %v1613, %v1609
    %v1774 = vpack.c.b16 %v1614, %v1610
    %v1775 = vpack.c.b16 %v1615, %v1611
    %v1776 = vpack.c.b16 %v1616, %v1612
    %v1777 = vpack.c.b16 %v1621, %v1617
    %v1778 = vpack.c.b16 %v1622, %v1618
    %v1779 = vpack.c.b16 %v1623, %v1619
    %v1780 = vpack.c.b16 %v1624, %v1620
    %v1781 = vpack.c.b16 %v1629, %v1625
    %v1782 = vpack.c.b16 %v1630, %v1626
    %v1783 = vpack.c.b16 %v1631, %v1627
    %v1784 = vpack.c.b16 %v1632, %v1628
    %v1785 = vpack.c.b16 %v1637, %v1633
    %v1786 = vpack.c.b16 %v1638, %v1634
    %v1787 = vpack.c.b16 %v1639, %v1635
    %v1788 = vpack.c.b16 %v1640, %v1636
    %v1789 = vpack.c.b16 %v1645, %v1641
    %v1790 = vpack.c.b16 %v1646, %v1642
    %v1791 = vpack.c.b16 %v1647, %v1643
    %v1792 = vpack.c.b16 %v1648, %v1644
    %v1793 = vpack.c.b16 %v1653, %v1649
    %v1794 = vpack.c.b16 %v1654, %v1650
    %v1795 = vpack.c.b16 %v1655, %v1651
    %v1796 = vpack.c.b16 %v1656, %v1652
    %v1797 = vpack.c.b16 %v1661, %v1657
    %v1798 = vpack.c.b16 %v1662, %v1658
    %v1799 = vpack.c.b16 %v1663, %v1659
    %v1800 = vpack.c.b16 %v1664, %v1660
    %v1801 = vpack.c.b16 %v1669, %v1665
    %v1802 = vpack.c.b16 %v1670, %v1666
    %v1803 = vpack.c.b16 %v1671, %v1667
    %v1804 = vpack.c.b16 %v1672, %v1668
    %v1805 = vpack.c.b16 %v1677, %v1673
    %v1806 = vpack.c.b16 %v1678, %v1674
    %v1807 = vpack.c.b16 %v1679, %v1675
    %v1808 = vpack.c.b16 %v1680, %v1676
    %1937 = vmatprep.subr.bf16.mxu0 %v1682
    %1938 = vmatpush1.bf16.msra.mxu0 %v1681
    %1939 = vmatprep.subr.bf16.mxu0 %v1686
    %1940 = vmatpush1.bf16.msra.mxu0 %v1685
    %1941 = vmatprep.subr.bf16.mxu0 %v1690
    %1942 = vmatpush1.bf16.msra.mxu0 %v1689
    %1943 = vmatprep.subr.bf16.mxu0 %v1694
    %1944 = vmatpush1.bf16.msra.mxu0 %v1693
    %1945 = vmatprep.subr.bf16.mxu0 %v1698
    %1946 = vmatpush1.bf16.msra.mxu0 %v1697
    %1947 = vmatprep.subr.bf16.mxu0 %v1702
    %1948 = vmatpush1.bf16.msra.mxu0 %v1701
    %1949 = vmatprep.subr.bf16.mxu0 %v1706
    %1950 = vmatpush1.bf16.msra.mxu0 %v1705
    %1951 = vmatprep.subr.bf16.mxu0 %v1710
    %1952 = vmatpush1.bf16.msra.mxu0 %v1709
    %1953 = vmatprep.subr.bf16.mxu0 %v1714
    %1954 = vmatpush1.bf16.msra.mxu0 %v1713
    %1955 = vmatprep.subr.bf16.mxu0 %v1718
    %1956 = vmatpush1.bf16.msra.mxu0 %v1717
    %1957 = vmatprep.subr.bf16.mxu0 %v1722
    %1958 = vmatpush1.bf16.msra.mxu0 %v1721
    %1959 = vmatprep.subr.bf16.mxu0 %v1726
    %1960 = vmatpush1.bf16.msra.mxu0 %v1725
    %1961 = vmatprep.subr.bf16.mxu0 %v1730
    %1962 = vmatpush1.bf16.msra.mxu0 %v1729
    %1963 = vmatprep.subr.bf16.mxu0 %v1734
    %1964 = vmatpush1.bf16.msra.mxu0 %v1733
    %1965 = vmatprep.subr.bf16.mxu0 %v1738
    %1966 = vmatpush1.bf16.msra.mxu0 %v1737
    %1967 = vmatprep.subr.bf16.mxu0 %v1742
    %1968 = vmatpush1.bf16.msra.mxu0 %v1741
    %1969 = vmatprep.mubr.bf16.mxu0 %v1144
    %1970 = vmatmul.mubr.bf16.gmra.mrb[0].mxu0 %v1143
    %v1971 = vpop.f32.mrb[0].mxu0
    %v1972 = vadd.f32 %v1280, %v1971
    %v1973 = vpop.f32.mrb[0].mxu0
    %v1974 = vadd.f32 %v1284, %v1973
    %v1975 = vpop.f32.mrb[0].mxu0
    %v1976 = vadd.f32 %v1280, %v1975
    %v1977 = vpop.f32.mrb[0].mxu0
    %v1978 = vadd.f32 %v1284, %v1977
    %1979 = vdwg.mxu0
    %1980 = vmatprep.subr.bf16.mxu0 %v1746
    %1981 = vmatpush1.bf16.msra.mxu0 %v1745
    %1982 = vmatprep.subr.bf16.mxu0 %v1750
    %1983 = vmatpush1.bf16.msra.mxu0 %v1749
    %1984 = vmatprep.subr.bf16.mxu0 %v1754
    %1985 = vmatpush1.bf16.msra.mxu0 %v1753
    %1986 = vmatprep.subr.bf16.mxu0 %v1758
    %1987 = vmatpush1.bf16.msra.mxu0 %v1757
    %1988 = vmatprep.subr.bf16.mxu0 %v1762
    %1989 = vmatpush1.bf16.msra.mxu0 %v1761
    %1990 = vmatprep.subr.bf16.mxu0 %v1766
    %1991 = vmatpush1.bf16.msra.mxu0 %v1765
    %1992 = vmatprep.subr.bf16.mxu0 %v1770
    %1993 = vmatpush1.bf16.msra.mxu0 %v1769
    %1994 = vmatprep.subr.bf16.mxu0 %v1774
    %1995 = vmatpush1.bf16.msra.mxu0 %v1773
    %1996 = vmatprep.subr.bf16.mxu0 %v1778
    %1997 = vmatpush1.bf16.msra.mxu0 %v1777
    %1998 = vmatprep.subr.bf16.mxu0 %v1782
    %1999 = vmatpush1.bf16.msra.mxu0 %v1781
    %2000 = vmatprep.subr.bf16.mxu0 %v1786
    %2001 = vmatpush1.bf16.msra.mxu0 %v1785
    %2002 = vmatprep.subr.bf16.mxu0 %v1790
    %2003 = vmatpush1.bf16.msra.mxu0 %v1789
    %2004 = vmatprep.subr.bf16.mxu0 %v1794
    %2005 = vmatpush1.bf16.msra.mxu0 %v1793
    %2006 = vmatprep.subr.bf16.mxu0 %v1798
    %2007 = vmatpush1.bf16.msra.mxu0 %v1797
    %2008 = vmatprep.subr.bf16.mxu0 %v1802
    %2009 = vmatpush1.bf16.msra.mxu0 %v1801
    %2010 = vmatprep.subr.bf16.mxu0 %v1806
    %2011 = vmatpush1.bf16.msra.mxu0 %v1805
    %2012 = vmatprep.mubr.bf16.mxu0 %v1146
    %2013 = vmatmul.mubr.bf16.gmra.mrb[0].mxu0 %v1145
    %v2014 = vpop.f32.mrb[0].mxu0
    %v2015 = vadd.f32 %v1972, %v2014
    %v2016 = vpop.f32.mrb[0].mxu0
    %v2017 = vadd.f32 %v1974, %v2016
    %v2018 = vpop.f32.mrb[0].mxu0
    %v2019 = vadd.f32 %v1976, %v2018
    %v2020 = vpop.f32.mrb[0].mxu0
    %v2021 = vadd.f32 %v1978, %v2020
    %2022 = vdwg.mxu0
    %2023 = vmatprep.subr.bf16.mxu0 %v1684
    %2024 = vmatpush1.bf16.msra.mxu0 %v1683
    %2025 = vmatprep.subr.bf16.mxu0 %v1688
    %2026 = vmatpush1.bf16.msra.mxu0 %v1687
    %2027 = vmatprep.subr.bf16.mxu0 %v1692
    %2028 = vmatpush1.bf16.msra.mxu0 %v1691
    %2029 = vmatprep.subr.bf16.mxu0 %v1696
    %2030 = vmatpush1.bf16.msra.mxu0 %v1695
    %2031 = vmatprep.subr.bf16.mxu0 %v1700
    %2032 = vmatpush1.bf16.msra.mxu0 %v1699
    %2033 = vmatprep.subr.bf16.mxu0 %v1704
    %2034 = vmatpush1.bf16.msra.mxu0 %v1703
    %2035 = vmatprep.subr.bf16.mxu0 %v1708
    %2036 = vmatpush1.bf16.msra.mxu0 %v1707
    %2037 = vmatprep.subr.bf16.mxu0 %v1712
    %2038 = vmatpush1.bf16.msra.mxu0 %v1711
    %2039 = vmatprep.subr.bf16.mxu0 %v1716
    %2040 = vmatpush1.bf16.msra.mxu0 %v1715
    %2041 = vmatprep.subr.bf16.mxu0 %v1720
    %2042 = vmatpush1.bf16.msra.mxu0 %v1719
    %2043 = vmatprep.subr.bf16.mxu0 %v1724
    %2044 = vmatpush1.bf16.msra.mxu0 %v1723
    %2045 = vmatprep.subr.bf16.mxu0 %v1728
    %2046 = vmatpush1.bf16.msra.mxu0 %v1727
    %2047 = vmatprep.subr.bf16.mxu0 %v1732
    %2048 = vmatpush1.bf16.msra.mxu0 %v1731
    %2049 = vmatprep.subr.bf16.mxu0 %v1736
    %2050 = vmatpush1.bf16.msra.mxu0 %v1735
    %2051 = vmatprep.subr.bf16.mxu0 %v1740
    %2052 = vmatpush1.bf16.msra.mxu0 %v1739
    %2053 = vmatprep.subr.bf16.mxu0 %v1744
    %2054 = vmatpush1.bf16.msra.mxu0 %v1743
    %2055 = vmatprep.mubr.bf16.mxu0 %v1144
    %2056 = vmatmul.mubr.bf16.gmra.mrb[0].mxu0 %v1143
    %v2057 = vpop.f32.mrb[0].mxu0
    %v2058 = vadd.f32 %v1288, %v2057
    %v2059 = vpop.f32.mrb[0].mxu0
    %v2060 = vadd.f32 %v1292, %v2059
    %v2061 = vpop.f32.mrb[0].mxu0
    %v2062 = vadd.f32 %v1288, %v2061
    %v2063 = vpop.f32.mrb[0].mxu0
    %v2064 = vadd.f32 %v1292, %v2063
    %2065 = vdwg.mxu0
    %2066 = vmatprep.subr.bf16.mxu0 %v1748
    %2067 = vmatpush1.bf16.msra.mxu0 %v1747
    %2068 = vmatprep.subr.bf16.mxu0 %v1752
    %2069 = vmatpush1.bf16.msra.mxu0 %v1751
    %2070 = vmatprep.subr.bf16.mxu0 %v1756
    %2071 = vmatpush1.bf16.msra.mxu0 %v1755
    %2072 = vmatprep.subr.bf16.mxu0 %v1760
    %2073 = vmatpush1.bf16.msra.mxu0 %v1759
    %2074 = vmatprep.subr.bf16.mxu0 %v1764
    %2075 = vmatpush1.bf16.msra.mxu0 %v1763
    %2076 = vmatprep.subr.bf16.mxu0 %v1768
    %2077 = vmatpush1.bf16.msra.mxu0 %v1767
    %2078 = vmatprep.subr.bf16.mxu0 %v1772
    %2079 = vmatpush1.bf16.msra.mxu0 %v1771
    %2080 = vmatprep.subr.bf16.mxu0 %v1776
    %2081 = vmatpush1.bf16.msra.mxu0 %v1775
    %2082 = vmatprep.subr.bf16.mxu0 %v1780
    %2083 = vmatpush1.bf16.msra.mxu0 %v1779
    %2084 = vmatprep.subr.bf16.mxu0 %v1784
    %2085 = vmatpush1.bf16.msra.mxu0 %v1783
    %2086 = vmatprep.subr.bf16.mxu0 %v1788
    %2087 = vmatpush1.bf16.msra.mxu0 %v1787
    %2088 = vmatprep.subr.bf16.mxu0 %v1792
    %2089 = vmatpush1.bf16.msra.mxu0 %v1791
    %2090 = vmatprep.subr.bf16.mxu0 %v1796
    %2091 = vmatpush1.bf16.msra.mxu0 %v1795
    %2092 = vmatprep.subr.bf16.mxu0 %v1800
    %2093 = vmatpush1.bf16.msra.mxu0 %v1799
    %2094 = vmatprep.subr.bf16.mxu0 %v1804
    %2095 = vmatpush1.bf16.msra.mxu0 %v1803
    %2096 = vmatprep.subr.bf16.mxu0 %v1808
    %2097 = vmatpush1.bf16.msra.mxu0 %v1807
    %2098 = vmatprep.mubr.bf16.mxu0 %v1146
    %2099 = vmatmul.mubr.bf16.gmra.mrb[0].mxu0 %v1145
    %v2100 = vpop.f32.mrb[0].mxu0
    %v2101 = vadd.f32 %v2058, %v2100
    %v2102 = vpop.f32.mrb[0].mxu0
    %v2103 = vadd.f32 %v2060, %v2102
    %v2104 = vpop.f32.mrb[0].mxu0
    %v2105 = vadd.f32 %v2062, %v2104
    %v2106 = vpop.f32.mrb[0].mxu0
    %v2107 = vadd.f32 %v2064, %v2106
    %2108 = vdwg.mxu0
    %vm2109 = vcmp.gt.f32.partialorder %v2015, 0.0
    %vm2110 = vcmp.gt.f32.partialorder %v2017, 0.0
    %vm2111 = vcmp.gt.f32.partialorder %v2101, 0.0
    %vm2112 = vcmp.gt.f32.partialorder %v2103, 0.0
    %vm2113 = vcmp.gt.f32.partialorder %v2019, 0.0
    %vm2114 = vcmp.gt.f32.partialorder %v2021, 0.0
    %vm2115 = vcmp.gt.f32.partialorder %v2105, 0.0
    %vm2116 = vcmp.gt.f32.partialorder %v2107, 0.0
    %v2117 = vmul.f32 %v2015, 0.01
    %v2118 = vmul.f32 %v2017, 0.01
    %v2119 = vmul.f32 %v2101, 0.01
    %v2120 = vmul.f32 %v2103, 0.01
    %v2121 = vmul.f32 %v2019, 0.01
    %v2122 = vmul.f32 %v2021, 0.01
    %v2123 = vmul.f32 %v2105, 0.01
    %v2124 = vmul.f32 %v2107, 0.01
    %v2125 = vsel %vm2109, %v2015, %v2117
    %v2126 = vsel %vm2110, %v2017, %v2118
    %v2127 = vsel %vm2111, %v2101, %v2119
    %v2128 = vsel %vm2112, %v2103, %v2120
    %v2129 = vsel %vm2113, %v2019, %v2121
    %v2130 = vsel %vm2114, %v2021, %v2122
    %v2131 = vsel %vm2115, %v2105, %v2123
    %v2132 = vsel %vm2116, %v2107, %v2124
    %v2133 = vpack.c.bf16 %v2129, %v2125
    %v2134 = vpack.c.bf16 %v2130, %v2126
    %v2135 = vpack.c.bf16 %v2131, %v2127
    %v2136 = vpack.c.bf16 %v2132, %v2128
    %v2137 = vld [vmem:[#allocation7] sm:$0xff]
    %v2138 = vld [vmem:[#allocation7 + $0x8] sm:$0xff]
    %v2139 = vld [vmem:[#allocation7 + $0x10] sm:$0xff]
    %v2140 = vld [vmem:[#allocation7 + $0x18] sm:$0xff]
    %v2141 = vld [vmem:[#allocation7 + $0x20] sm:$0xff]
    %v2142 = vld [vmem:[#allocation7 + $0x28] sm:$0xff]
    %v2143 = vld [vmem:[#allocation7 + $0x30] sm:$0xff]
    %v2144 = vld [vmem:[#allocation7 + $0x38] sm:$0xff]
    %v2145 = vld [vmem:[#allocation7 + $0x40] sm:$0xff]
    %v2146 = vld [vmem:[#allocation7 + $0x48] sm:$0xff]
    %v2147 = vld [vmem:[#allocation7 + $0x50] sm:$0xff]
    %v2148 = vld [vmem:[#allocation7 + $0x58] sm:$0xff]
    %v2149 = vld [vmem:[#allocation7 + $0x60] sm:$0xff]
    %v2150 = vld [vmem:[#allocation7 + $0x68] sm:$0xff]
    %v2151 = vld [vmem:[#allocation7 + $0x70] sm:$0xff]
    %v2152 = vld [vmem:[#allocation7 + $0x78] sm:$0xff]
    %v2153 = vld [vmem:[#allocation7 + $0x80] sm:$0xff]
    %v2154 = vld [vmem:[#allocation7 + $0x88] sm:$0xff]
    %v2155 = vld [vmem:[#allocation7 + $0x90] sm:$0xff]
    %v2156 = vld [vmem:[#allocation7 + $0x98] sm:$0xff]
    %v2157 = vld [vmem:[#allocation7 + $0xa0] sm:$0xff]
    %v2158 = vld [vmem:[#allocation7 + $0xa8] sm:$0xff]
    %v2159 = vld [vmem:[#allocation7 + $0xb0] sm:$0xff]
    %v2160 = vld [vmem:[#allocation7 + $0xb8] sm:$0xff]
    %v2161 = vld [vmem:[#allocation7 + $0xc0] sm:$0xff]
    %v2162 = vld [vmem:[#allocation7 + $0xc8] sm:$0xff]
    %v2163 = vld [vmem:[#allocation7 + $0xd0] sm:$0xff]
    %v2164 = vld [vmem:[#allocation7 + $0xd8] sm:$0xff]
    %v2165 = vld [vmem:[#allocation7 + $0xe0] sm:$0xff]
    %v2166 = vld [vmem:[#allocation7 + $0xe8] sm:$0xff]
    %v2167 = vld [vmem:[#allocation7 + $0xf0] sm:$0xff]
    %v2168 = vld [vmem:[#allocation7 + $0xf8] sm:$0xff]
    %v2169 = vld [vmem:[#allocation7 + $0x100] sm:$0xff]
    %v2170 = vld [vmem:[#allocation7 + $0x108] sm:$0xff]
    %v2171 = vld [vmem:[#allocation7 + $0x110] sm:$0xff]
    %v2172 = vld [vmem:[#allocation7 + $0x118] sm:$0xff]
    %v2173 = vld [vmem:[#allocation7 + $0x120] sm:$0xff]
    %v2174 = vld [vmem:[#allocation7 + $0x128] sm:$0xff]
    %v2175 = vld [vmem:[#allocation7 + $0x130] sm:$0xff]
    %v2176 = vld [vmem:[#allocation7 + $0x138] sm:$0xff]
    %v2177 = vld [vmem:[#allocation7 + $0x140] sm:$0xff]
    %v2178 = vld [vmem:[#allocation7 + $0x148] sm:$0xff]
    %v2179 = vld [vmem:[#allocation7 + $0x150] sm:$0xff]
    %v2180 = vld [vmem:[#allocation7 + $0x158] sm:$0xff]
    %v2181 = vld [vmem:[#allocation7 + $0x160] sm:$0xff]
    %v2182 = vld [vmem:[#allocation7 + $0x168] sm:$0xff]
    %v2183 = vld [vmem:[#allocation7 + $0x170] sm:$0xff]
    %v2184 = vld [vmem:[#allocation7 + $0x178] sm:$0xff]
    %v2185 = vld [vmem:[#allocation7 + $0x180] sm:$0xff]
    %v2186 = vld [vmem:[#allocation7 + $0x188] sm:$0xff]
    %v2187 = vld [vmem:[#allocation7 + $0x190] sm:$0xff]
    %v2188 = vld [vmem:[#allocation7 + $0x198] sm:$0xff]
    %v2189 = vld [vmem:[#allocation7 + $0x1a0] sm:$0xff]
    %v2190 = vld [vmem:[#allocation7 + $0x1a8] sm:$0xff]
    %v2191 = vld [vmem:[#allocation7 + $0x1b0] sm:$0xff]
    %v2192 = vld [vmem:[#allocation7 + $0x1b8] sm:$0xff]
    %v2193 = vld [vmem:[#allocation7 + $0x1c0] sm:$0xff]
    %v2194 = vld [vmem:[#allocation7 + $0x1c8] sm:$0xff]
    %v2195 = vld [vmem:[#allocation7 + $0x1d0] sm:$0xff]
    %v2196 = vld [vmem:[#allocation7 + $0x1d8] sm:$0xff]
    %v2197 = vld [vmem:[#allocation7 + $0x1e0] sm:$0xff]
    %v2198 = vld [vmem:[#allocation7 + $0x1e8] sm:$0xff]
    %v2199 = vld [vmem:[#allocation7 + $0x1f0] sm:$0xff]
    %v2200 = vld [vmem:[#allocation7 + $0x1f8] sm:$0xff]
    %v2201 = vld [vmem:[%s8] sm:$0x3]
    %v2203 = vlaneseq
    %v2204 = vshrl.u32 %v2203, 7
    %v2205 = vsub.s32 0, %v2204
    %v2206 = vrot.slane %v2201, %v2205
    %v2207 = vlaneseq
    %v2208 = vshrl.u32 %v2207, 7
    %v2209 = vsub.s32 1, %v2208
    %v2210 = vrot.slane %v2201, %v2209
    %v2277 = vunpack.c.l.b16 %v2137
    %v2278 = vunpack.c.h.b16 %v2137
    %v2279 = vunpack.c.l.b16 %v2138
    %v2280 = vunpack.c.h.b16 %v2138
    %v2281 = vunpack.c.l.b16 %v2139
    %v2282 = vunpack.c.h.b16 %v2139
    %v2283 = vunpack.c.l.b16 %v2140
    %v2284 = vunpack.c.h.b16 %v2140
    %v2285 = vunpack.c.l.b16 %v2141
    %v2286 = vunpack.c.h.b16 %v2141
    %v2287 = vunpack.c.l.b16 %v2142
    %v2288 = vunpack.c.h.b16 %v2142
    %v2289 = vunpack.c.l.b16 %v2143
    %v2290 = vunpack.c.h.b16 %v2143
    %v2291 = vunpack.c.l.b16 %v2144
    %v2292 = vunpack.c.h.b16 %v2144
    %v2293 = vunpack.c.l.b16 %v2145
    %v2294 = vunpack.c.h.b16 %v2145
    %v2295 = vunpack.c.l.b16 %v2146
    %v2296 = vunpack.c.h.b16 %v2146
    %v2297 = vunpack.c.l.b16 %v2147
    %v2298 = vunpack.c.h.b16 %v2147
    %v2299 = vunpack.c.l.b16 %v2148
    %v2300 = vunpack.c.h.b16 %v2148
    %v2301 = vunpack.c.l.b16 %v2149
    %v2302 = vunpack.c.h.b16 %v2149
    %v2303 = vunpack.c.l.b16 %v2150
    %v2304 = vunpack.c.h.b16 %v2150
    %v2305 = vunpack.c.l.b16 %v2151
    %v2306 = vunpack.c.h.b16 %v2151
    %v2307 = vunpack.c.l.b16 %v2152
    %v2308 = vunpack.c.h.b16 %v2152
    %v2309 = vunpack.c.l.b16 %v2153
    %v2310 = vunpack.c.h.b16 %v2153
    %v2311 = vunpack.c.l.b16 %v2154
    %v2312 = vunpack.c.h.b16 %v2154
    %v2313 = vunpack.c.l.b16 %v2155
    %v2314 = vunpack.c.h.b16 %v2155
    %v2315 = vunpack.c.l.b16 %v2156
    %v2316 = vunpack.c.h.b16 %v2156
    %v2317 = vunpack.c.l.b16 %v2157
    %v2318 = vunpack.c.h.b16 %v2157
    %v2319 = vunpack.c.l.b16 %v2158
    %v2320 = vunpack.c.h.b16 %v2158
    %v2321 = vunpack.c.l.b16 %v2159
    %v2322 = vunpack.c.h.b16 %v2159
    %v2323 = vunpack.c.l.b16 %v2160
    %v2324 = vunpack.c.h.b16 %v2160
    %v2325 = vunpack.c.l.b16 %v2161
    %v2326 = vunpack.c.h.b16 %v2161
    %v2327 = vunpack.c.l.b16 %v2162
    %v2328 = vunpack.c.h.b16 %v2162
    %v2329 = vunpack.c.l.b16 %v2163
    %v2330 = vunpack.c.h.b16 %v2163
    %v2331 = vunpack.c.l.b16 %v2164
    %v2332 = vunpack.c.h.b16 %v2164
    %v2333 = vunpack.c.l.b16 %v2165
    %v2334 = vunpack.c.h.b16 %v2165
    %v2335 = vunpack.c.l.b16 %v2166
    %v2336 = vunpack.c.h.b16 %v2166
    %v2337 = vunpack.c.l.b16 %v2167
    %v2338 = vunpack.c.h.b16 %v2167
    %v2339 = vunpack.c.l.b16 %v2168
    %v2340 = vunpack.c.h.b16 %v2168
    %v2341 = vunpack.c.l.b16 %v2169
    %v2342 = vunpack.c.h.b16 %v2169
    %v2343 = vunpack.c.l.b16 %v2170
    %v2344 = vunpack.c.h.b16 %v2170
    %v2345 = vunpack.c.l.b16 %v2171
    %v2346 = vunpack.c.h.b16 %v2171
    %v2347 = vunpack.c.l.b16 %v2172
    %v2348 = vunpack.c.h.b16 %v2172
    %v2349 = vunpack.c.l.b16 %v2173
    %v2350 = vunpack.c.h.b16 %v2173
    %v2351 = vunpack.c.l.b16 %v2174
    %v2352 = vunpack.c.h.b16 %v2174
    %v2353 = vunpack.c.l.b16 %v2175
    %v2354 = vunpack.c.h.b16 %v2175
    %v2355 = vunpack.c.l.b16 %v2176
    %v2356 = vunpack.c.h.b16 %v2176
    %v2357 = vunpack.c.l.b16 %v2177
    %v2358 = vunpack.c.h.b16 %v2177
    %v2359 = vunpack.c.l.b16 %v2178
    %v2360 = vunpack.c.h.b16 %v2178
    %v2361 = vunpack.c.l.b16 %v2179
    %v2362 = vunpack.c.h.b16 %v2179
    %v2363 = vunpack.c.l.b16 %v2180
    %v2364 = vunpack.c.h.b16 %v2180
    %v2365 = vunpack.c.l.b16 %v2181
    %v2366 = vunpack.c.h.b16 %v2181
    %v2367 = vunpack.c.l.b16 %v2182
    %v2368 = vunpack.c.h.b16 %v2182
    %v2369 = vunpack.c.l.b16 %v2183
    %v2370 = vunpack.c.h.b16 %v2183
    %v2371 = vunpack.c.l.b16 %v2184
    %v2372 = vunpack.c.h.b16 %v2184
    %v2373 = vunpack.c.l.b16 %v2185
    %v2374 = vunpack.c.h.b16 %v2185
    %v2375 = vunpack.c.l.b16 %v2186
    %v2376 = vunpack.c.h.b16 %v2186
    %v2377 = vunpack.c.l.b16 %v2187
    %v2378 = vunpack.c.h.b16 %v2187
    %v2379 = vunpack.c.l.b16 %v2188
    %v2380 = vunpack.c.h.b16 %v2188
    %v2381 = vunpack.c.l.b16 %v2189
    %v2382 = vunpack.c.h.b16 %v2189
    %v2383 = vunpack.c.l.b16 %v2190
    %v2384 = vunpack.c.h.b16 %v2190
    %v2385 = vunpack.c.l.b16 %v2191
    %v2386 = vunpack.c.h.b16 %v2191
    %v2387 = vunpack.c.l.b16 %v2192
    %v2388 = vunpack.c.h.b16 %v2192
    %v2389 = vunpack.c.l.b16 %v2193
    %v2390 = vunpack.c.h.b16 %v2193
    %v2391 = vunpack.c.l.b16 %v2194
    %v2392 = vunpack.c.h.b16 %v2194
    %v2393 = vunpack.c.l.b16 %v2195
    %v2394 = vunpack.c.h.b16 %v2195
    %v2395 = vunpack.c.l.b16 %v2196
    %v2396 = vunpack.c.h.b16 %v2196
    %v2397 = vunpack.c.l.b16 %v2197
    %v2398 = vunpack.c.h.b16 %v2197
    %v2399 = vunpack.c.l.b16 %v2198
    %v2400 = vunpack.c.h.b16 %v2198
    %v2401 = vunpack.c.l.b16 %v2199
    %v2402 = vunpack.c.h.b16 %v2199
    %v2403 = vunpack.c.l.b16 %v2200
    %v2404 = vunpack.c.h.b16 %v2200
    %v2405 = vpack.c.b16 %v2279, %v2277
    %v2406 = vpack.c.b16 %v2280, %v2278
    %v2407 = vpack.c.b16 %v2283, %v2281
    %v2408 = vpack.c.b16 %v2284, %v2282
    %v2409 = vpack.c.b16 %v2287, %v2285
    %v2410 = vpack.c.b16 %v2288, %v2286
    %v2411 = vpack.c.b16 %v2291, %v2289
    %v2412 = vpack.c.b16 %v2292, %v2290
    %v2413 = vpack.c.b16 %v2295, %v2293
    %v2414 = vpack.c.b16 %v2296, %v2294
    %v2415 = vpack.c.b16 %v2299, %v2297
    %v2416 = vpack.c.b16 %v2300, %v2298
    %v2417 = vpack.c.b16 %v2303, %v2301
    %v2418 = vpack.c.b16 %v2304, %v2302
    %v2419 = vpack.c.b16 %v2307, %v2305
    %v2420 = vpack.c.b16 %v2308, %v2306
    %v2421 = vpack.c.b16 %v2311, %v2309
    %v2422 = vpack.c.b16 %v2312, %v2310
    %v2423 = vpack.c.b16 %v2315, %v2313
    %v2424 = vpack.c.b16 %v2316, %v2314
    %v2425 = vpack.c.b16 %v2319, %v2317
    %v2426 = vpack.c.b16 %v2320, %v2318
    %v2427 = vpack.c.b16 %v2323, %v2321
    %v2428 = vpack.c.b16 %v2324, %v2322
    %v2429 = vpack.c.b16 %v2327, %v2325
    %v2430 = vpack.c.b16 %v2328, %v2326
    %v2431 = vpack.c.b16 %v2331, %v2329
    %v2432 = vpack.c.b16 %v2332, %v2330
    %v2433 = vpack.c.b16 %v2335, %v2333
    %v2434 = vpack.c.b16 %v2336, %v2334
    %v2435 = vpack.c.b16 %v2339, %v2337
    %v2436 = vpack.c.b16 %v2340, %v2338
    %v2437 = vpack.c.b16 %v2343, %v2341
    %v2438 = vpack.c.b16 %v2344, %v2342
    %v2439 = vpack.c.b16 %v2347, %v2345
    %v2440 = vpack.c.b16 %v2348, %v2346
    %v2441 = vpack.c.b16 %v2351, %v2349
    %v2442 = vpack.c.b16 %v2352, %v2350
    %v2443 = vpack.c.b16 %v2355, %v2353
    %v2444 = vpack.c.b16 %v2356, %v2354
    %v2445 = vpack.c.b16 %v2359, %v2357
    %v2446 = vpack.c.b16 %v2360, %v2358
    %v2447 = vpack.c.b16 %v2363, %v2361
    %v2448 = vpack.c.b16 %v2364, %v2362
    %v2449 = vpack.c.b16 %v2367, %v2365
    %v2450 = vpack.c.b16 %v2368, %v2366
    %v2451 = vpack.c.b16 %v2371, %v2369
    %v2452 = vpack.c.b16 %v2372, %v2370
    %v2453 = vpack.c.b16 %v2375, %v2373
    %v2454 = vpack.c.b16 %v2376, %v2374
    %v2455 = vpack.c.b16 %v2379, %v2377
    %v2456 = vpack.c.b16 %v2380, %v2378
    %v2457 = vpack.c.b16 %v2383, %v2381
    %v2458 = vpack.c.b16 %v2384, %v2382
    %v2459 = vpack.c.b16 %v2387, %v2385
    %v2460 = vpack.c.b16 %v2388, %v2386
    %v2461 = vpack.c.b16 %v2391, %v2389
    %v2462 = vpack.c.b16 %v2392, %v2390
    %v2463 = vpack.c.b16 %v2395, %v2393
    %v2464 = vpack.c.b16 %v2396, %v2394
    %v2465 = vpack.c.b16 %v2399, %v2397
    %v2466 = vpack.c.b16 %v2400, %v2398
    %v2467 = vpack.c.b16 %v2403, %v2401
    %v2468 = vpack.c.b16 %v2404, %v2402
    %2533 = vmatprep.subr.bf16.mxu0 %v2406
    %2534 = vmatpush1.bf16.msra.mxu0 %v2405
    %2535 = vmatprep.subr.bf16.mxu0 %v2408
    %2536 = vmatpush1.bf16.msra.mxu0 %v2407
    %2537 = vmatprep.subr.bf16.mxu0 %v2410
    %2538 = vmatpush1.bf16.msra.mxu0 %v2409
    %2539 = vmatprep.subr.bf16.mxu0 %v2412
    %2540 = vmatpush1.bf16.msra.mxu0 %v2411
    %2541 = vmatprep.subr.bf16.mxu0 %v2414
    %2542 = vmatpush1.bf16.msra.mxu0 %v2413
    %2543 = vmatprep.subr.bf16.mxu0 %v2416
    %2544 = vmatpush1.bf16.msra.mxu0 %v2415
    %2545 = vmatprep.subr.bf16.mxu0 %v2418
    %2546 = vmatpush1.bf16.msra.mxu0 %v2417
    %2547 = vmatprep.subr.bf16.mxu0 %v2420
    %2548 = vmatpush1.bf16.msra.mxu0 %v2419
    %2549 = vmatprep.subr.bf16.mxu0 %v2422
    %2550 = vmatpush1.bf16.msra.mxu0 %v2421
    %2551 = vmatprep.subr.bf16.mxu0 %v2424
    %2552 = vmatpush1.bf16.msra.mxu0 %v2423
    %2553 = vmatprep.subr.bf16.mxu0 %v2426
    %2554 = vmatpush1.bf16.msra.mxu0 %v2425
    %2555 = vmatprep.subr.bf16.mxu0 %v2428
    %2556 = vmatpush1.bf16.msra.mxu0 %v2427
    %2557 = vmatprep.subr.bf16.mxu0 %v2430
    %2558 = vmatpush1.bf16.msra.mxu0 %v2429
    %2559 = vmatprep.subr.bf16.mxu0 %v2432
    %2560 = vmatpush1.bf16.msra.mxu0 %v2431
    %2561 = vmatprep.subr.bf16.mxu0 %v2434
    %2562 = vmatpush1.bf16.msra.mxu0 %v2433
    %2563 = vmatprep.subr.bf16.mxu0 %v2436
    %2564 = vmatpush1.bf16.msra.mxu0 %v2435
    %2565 = vmatprep.mubr.bf16.mxu0 %v2134
    %2566 = vmatmul.mubr.bf16.gmra.mrb[0].mxu0 %v2133
    %v2567 = vpop.f32.mrb[0].mxu0
    %v2568 = vadd.f32 %v2206, %v2567
    %v2569 = vpop.f32.mrb[0].mxu0
    %v2570 = vadd.f32 %v2210, %v2569
    %v2571 = vpop.f32.mrb[0].mxu0
    %v2572 = vadd.f32 %v2206, %v2571
    %v2573 = vpop.f32.mrb[0].mxu0
    %v2574 = vadd.f32 %v2210, %v2573
    %2575 = vdwg.mxu0
    %2576 = vmatprep.subr.bf16.mxu0 %v2438
    %2577 = vmatpush1.bf16.msra.mxu0 %v2437
    %2578 = vmatprep.subr.bf16.mxu0 %v2440
    %2579 = vmatpush1.bf16.msra.mxu0 %v2439
    %2580 = vmatprep.subr.bf16.mxu0 %v2442
    %2581 = vmatpush1.bf16.msra.mxu0 %v2441
    %2582 = vmatprep.subr.bf16.mxu0 %v2444
    %2583 = vmatpush1.bf16.msra.mxu0 %v2443
    %2584 = vmatprep.subr.bf16.mxu0 %v2446
    %2585 = vmatpush1.bf16.msra.mxu0 %v2445
    %2586 = vmatprep.subr.bf16.mxu0 %v2448
    %2587 = vmatpush1.bf16.msra.mxu0 %v2447
    %2588 = vmatprep.subr.bf16.mxu0 %v2450
    %2589 = vmatpush1.bf16.msra.mxu0 %v2449
    %2590 = vmatprep.subr.bf16.mxu0 %v2452
    %2591 = vmatpush1.bf16.msra.mxu0 %v2451
    %2592 = vmatprep.subr.bf16.mxu0 %v2454
    %2593 = vmatpush1.bf16.msra.mxu0 %v2453
    %2594 = vmatprep.subr.bf16.mxu0 %v2456
    %2595 = vmatpush1.bf16.msra.mxu0 %v2455
    %2596 = vmatprep.subr.bf16.mxu0 %v2458
    %2597 = vmatpush1.bf16.msra.mxu0 %v2457
    %2598 = vmatprep.subr.bf16.mxu0 %v2460
    %2599 = vmatpush1.bf16.msra.mxu0 %v2459
    %2600 = vmatprep.subr.bf16.mxu0 %v2462
    %2601 = vmatpush1.bf16.msra.mxu0 %v2461
    %2602 = vmatprep.subr.bf16.mxu0 %v2464
    %2603 = vmatpush1.bf16.msra.mxu0 %v2463
    %2604 = vmatprep.subr.bf16.mxu0 %v2466
    %2605 = vmatpush1.bf16.msra.mxu0 %v2465
    %2606 = vmatprep.subr.bf16.mxu0 %v2468
    %2607 = vmatpush1.bf16.msra.mxu0 %v2467
    %2608 = vmatprep.mubr.bf16.mxu0 %v2136
    %2609 = vmatmul.mubr.bf16.gmra.mrb[0].mxu0 %v2135
    %v2610 = vpop.f32.mrb[0].mxu0
    %v2611 = vadd.f32 %v2568, %v2610
    %v2612 = vpop.f32.mrb[0].mxu0
    %v2613 = vadd.f32 %v2570, %v2612
    %v2614 = vpop.f32.mrb[0].mxu0
    %v2615 = vadd.f32 %v2572, %v2614
    %v2616 = vpop.f32.mrb[0].mxu0
    %v2617 = vadd.f32 %v2574, %v2616
    %2618 = vdwg.mxu0
    %vm2619 = vcmp.gt.f32.partialorder %v2611, 0.0
    %vm2620 = vcmp.gt.f32.partialorder %v2613, 0.0
    %vm2621 = vcmp.gt.f32.partialorder %v2615, 0.0
    %vm2622 = vcmp.gt.f32.partialorder %v2617, 0.0
    %v2623 = vmul.f32 %v2611, 0.01
    %v2624 = vmul.f32 %v2613, 0.01
    %v2625 = vmul.f32 %v2615, 0.01
    %v2626 = vmul.f32 %v2617, 0.01
    %v2627 = vsel %vm2619, %v2611, %v2623
    %v2628 = vsel %vm2620, %v2613, %v2624
    %v2629 = vsel %vm2621, %v2615, %v2625
    %v2630 = vsel %vm2622, %v2617, %v2626
    %v2631 = vpack.c.bf16 %v2629, %v2627
    %v2632 = vpack.c.bf16 %v2630, %v2628
    %v2633 = vld [vmem:[#allocation9] sm:$0xff]
    %v2634 = vld [vmem:[#allocation9 + $0x8] sm:$0xff]
    %v2635 = vld [vmem:[#allocation9 + $0x10] sm:$0xff]
    %v2636 = vld [vmem:[#allocation9 + $0x18] sm:$0xf]
    %v2637 = vld [vmem:[#allocation9 + $0x1c] sm:$0xff]
    %v2638 = vld [vmem:[#allocation9 + $0x24] sm:$0xff]
    %v2639 = vld [vmem:[#allocation9 + $0x2c] sm:$0xff]
    %v2640 = vld [vmem:[#allocation9 + $0x34] sm:$0xf]
    %v2641 = vld [vmem:[#allocation9 + $0x38] sm:$0xff]
    %v2642 = vld [vmem:[#allocation9 + $0x40] sm:$0xff]
    %v2643 = vld [vmem:[#allocation9 + $0x48] sm:$0xff]
    %v2644 = vld [vmem:[#allocation9 + $0x50] sm:$0xf]
    %v2645 = vld [vmem:[#allocation9 + $0x54] sm:$0xff]
    %v2646 = vld [vmem:[#allocation9 + $0x5c] sm:$0xff]
    %v2647 = vld [vmem:[#allocation9 + $0x64] sm:$0xff]
    %v2648 = vld [vmem:[#allocation9 + $0x6c] sm:$0xf]
    %v2649 = vld [vmem:[#allocation9 + $0x70] sm:$0xff]
    %v2650 = vld [vmem:[#allocation9 + $0x78] sm:$0xff]
    %v2651 = vld [vmem:[#allocation9 + $0x80] sm:$0xff]
    %v2652 = vld [vmem:[#allocation9 + $0x88] sm:$0xf]
    %v2653 = vld [vmem:[#allocation9 + $0x8c] sm:$0xff]
    %v2654 = vld [vmem:[#allocation9 + $0x94] sm:$0xff]
    %v2655 = vld [vmem:[#allocation9 + $0x9c] sm:$0xff]
    %v2656 = vld [vmem:[#allocation9 + $0xa4] sm:$0xf]
    %v2657 = vld [vmem:[#allocation9 + $0xa8] sm:$0xff]
    %v2658 = vld [vmem:[#allocation9 + $0xb0] sm:$0xff]
    %v2659 = vld [vmem:[#allocation9 + $0xb8] sm:$0xff]
    %v2660 = vld [vmem:[#allocation9 + $0xc0] sm:$0xf]
    %v2661 = vld [vmem:[#allocation9 + $0xc4] sm:$0xff]
    %v2662 = vld [vmem:[#allocation9 + $0xcc] sm:$0xff]
    %v2663 = vld [vmem:[#allocation9 + $0xd4] sm:$0xff]
    %v2664 = vld [vmem:[#allocation9 + $0xdc] sm:$0xf]
    %v2665 = vld [vmem:[#allocation9 + $0xe0] sm:$0xff]
    %v2666 = vld [vmem:[#allocation9 + $0xe8] sm:$0xff]
    %v2667 = vld [vmem:[#allocation9 + $0xf0] sm:$0xff]
    %v2668 = vld [vmem:[#allocation9 + $0xf8] sm:$0xf]
    %v2669 = vld [vmem:[#allocation9 + $0xfc] sm:$0xff]
    %v2670 = vld [vmem:[#allocation9 + $0x104] sm:$0xff]
    %v2671 = vld [vmem:[#allocation9 + $0x10c] sm:$0xff]
    %v2672 = vld [vmem:[#allocation9 + $0x114] sm:$0xf]
    %v2673 = vld [vmem:[#allocation9 + $0x118] sm:$0xff]
    %v2674 = vld [vmem:[#allocation9 + $0x120] sm:$0xff]
    %v2675 = vld [vmem:[#allocation9 + $0x128] sm:$0xff]
    %v2676 = vld [vmem:[#allocation9 + $0x130] sm:$0xf]
    %v2677 = vld [vmem:[#allocation9 + $0x134] sm:$0xff]
    %v2678 = vld [vmem:[#allocation9 + $0x13c] sm:$0xff]
    %v2679 = vld [vmem:[#allocation9 + $0x144] sm:$0xff]
    %v2680 = vld [vmem:[#allocation9 + $0x14c] sm:$0xf]
    %v2681 = vld [vmem:[#allocation9 + $0x150] sm:$0xff]
    %v2682 = vld [vmem:[#allocation9 + $0x158] sm:$0xff]
    %v2683 = vld [vmem:[#allocation9 + $0x160] sm:$0xff]
    %v2684 = vld [vmem:[#allocation9 + $0x168] sm:$0xf]
    %v2685 = vld [vmem:[#allocation9 + $0x16c] sm:$0xff]
    %v2686 = vld [vmem:[#allocation9 + $0x174] sm:$0xff]
    %v2687 = vld [vmem:[#allocation9 + $0x17c] sm:$0xff]
    %v2688 = vld [vmem:[#allocation9 + $0x184] sm:$0xf]
    %v2689 = vld [vmem:[#allocation9 + $0x188] sm:$0xff]
    %v2690 = vld [vmem:[#allocation9 + $0x190] sm:$0xff]
    %v2691 = vld [vmem:[#allocation9 + $0x198] sm:$0xff]
    %v2692 = vld [vmem:[#allocation9 + $0x1a0] sm:$0xf]
    %v2693 = vld [vmem:[#allocation9 + $0x1a4] sm:$0xff]
    %v2694 = vld [vmem:[#allocation9 + $0x1ac] sm:$0xff]
    %v2695 = vld [vmem:[#allocation9 + $0x1b4] sm:$0xff]
    %v2696 = vld [vmem:[#allocation9 + $0x1bc] sm:$0xf]
    %v2697 = vld [vmem:[#allocation9 + $0x1c0] sm:$0xff]
    %v2698 = vld [vmem:[#allocation9 + $0x1c8] sm:$0xff]
    %v2699 = vld [vmem:[#allocation9 + $0x1d0] sm:$0xff]
    %v2700 = vld [vmem:[#allocation9 + $0x1d8] sm:$0xf]
    %v2701 = vld [vmem:[#allocation9 + $0x1dc] sm:$0xff]
    %v2702 = vld [vmem:[#allocation9 + $0x1e4] sm:$0xff]
    %v2703 = vld [vmem:[#allocation9 + $0x1ec] sm:$0xff]
    %v2704 = vld [vmem:[#allocation9 + $0x1f4] sm:$0xf]
    %v2705 = vld [vmem:[#allocation9 + $0x1f8] sm:$0xff]
    %v2706 = vld [vmem:[#allocation9 + $0x200] sm:$0xff]
    %v2707 = vld [vmem:[#allocation9 + $0x208] sm:$0xff]
    %v2708 = vld [vmem:[#allocation9 + $0x210] sm:$0xf]
    %v2709 = vld [vmem:[#allocation9 + $0x214] sm:$0xff]
    %v2710 = vld [vmem:[#allocation9 + $0x21c] sm:$0xff]
    %v2711 = vld [vmem:[#allocation9 + $0x224] sm:$0xff]
    %v2712 = vld [vmem:[#allocation9 + $0x22c] sm:$0xf]
    %v2713 = vld [vmem:[#allocation9 + $0x230] sm:$0xff]
    %v2714 = vld [vmem:[#allocation9 + $0x238] sm:$0xff]
    %v2715 = vld [vmem:[#allocation9 + $0x240] sm:$0xff]
    %v2716 = vld [vmem:[#allocation9 + $0x248] sm:$0xf]
    %v2717 = vld [vmem:[#allocation9 + $0x24c] sm:$0xff]
    %v2718 = vld [vmem:[#allocation9 + $0x254] sm:$0xff]
    %v2719 = vld [vmem:[#allocation9 + $0x25c] sm:$0xff]
    %v2720 = vld [vmem:[#allocation9 + $0x264] sm:$0xf]
    %v2721 = vld [vmem:[#allocation9 + $0x268] sm:$0xff]
    %v2722 = vld [vmem:[#allocation9 + $0x270] sm:$0xff]
    %v2723 = vld [vmem:[#allocation9 + $0x278] sm:$0xff]
    %v2724 = vld [vmem:[#allocation9 + $0x280] sm:$0xf]
    %v2725 = vld [vmem:[#allocation9 + $0x284] sm:$0xff]
    %v2726 = vld [vmem:[#allocation9 + $0x28c] sm:$0xff]
    %v2727 = vld [vmem:[#allocation9 + $0x294] sm:$0xff]
    %v2728 = vld [vmem:[#allocation9 + $0x29c] sm:$0xf]
    %v2729 = vld [vmem:[#allocation9 + $0x2a0] sm:$0xff]
    %v2730 = vld [vmem:[#allocation9 + $0x2a8] sm:$0xff]
    %v2731 = vld [vmem:[#allocation9 + $0x2b0] sm:$0xff]
    %v2732 = vld [vmem:[#allocation9 + $0x2b8] sm:$0xf]
    %v2733 = vld [vmem:[#allocation9 + $0x2bc] sm:$0xff]
    %v2734 = vld [vmem:[#allocation9 + $0x2c4] sm:$0xff]
    %v2735 = vld [vmem:[#allocation9 + $0x2cc] sm:$0xff]
    %v2736 = vld [vmem:[#allocation9 + $0x2d4] sm:$0xf]
    %v2737 = vld [vmem:[#allocation9 + $0x2d8] sm:$0xff]
    %v2738 = vld [vmem:[#allocation9 + $0x2e0] sm:$0xff]
    %v2739 = vld [vmem:[#allocation9 + $0x2e8] sm:$0xff]
    %v2740 = vld [vmem:[#allocation9 + $0x2f0] sm:$0xf]
    %v2741 = vld [vmem:[#allocation9 + $0x2f4] sm:$0xff]
    %v2742 = vld [vmem:[#allocation9 + $0x2fc] sm:$0xff]
    %v2743 = vld [vmem:[#allocation9 + $0x304] sm:$0xff]
    %v2744 = vld [vmem:[#allocation9 + $0x30c] sm:$0xf]
    %v2745 = vld [vmem:[#allocation9 + $0x310] sm:$0xff]
    %v2746 = vld [vmem:[#allocation9 + $0x318] sm:$0xff]
    %v2747 = vld [vmem:[#allocation9 + $0x320] sm:$0xff]
    %v2748 = vld [vmem:[#allocation9 + $0x328] sm:$0xf]
    %v2749 = vld [vmem:[#allocation9 + $0x32c] sm:$0xff]
    %v2750 = vld [vmem:[#allocation9 + $0x334] sm:$0xff]
    %v2751 = vld [vmem:[#allocation9 + $0x33c] sm:$0xff]
    %v2752 = vld [vmem:[#allocation9 + $0x344] sm:$0xf]
    %v2753 = vld [vmem:[#allocation9 + $0x348] sm:$0xff]
    %v2754 = vld [vmem:[#allocation9 + $0x350] sm:$0xff]
    %v2755 = vld [vmem:[#allocation9 + $0x358] sm:$0xff]
    %v2756 = vld [vmem:[#allocation9 + $0x360] sm:$0xf]
    %v2757 = vld [vmem:[#allocation9 + $0x364] sm:$0xff]
    %v2758 = vld [vmem:[#allocation9 + $0x36c] sm:$0xff]
    %v2759 = vld [vmem:[#allocation9 + $0x374] sm:$0xff]
    %v2760 = vld [vmem:[#allocation9 + $0x37c] sm:$0xf]
    %v2761 = vld [vmem:[%s10] sm:$0xff]
    %v2763 = vlaneseq
    %v2764 = vshrl.u32 %v2763, 7
    %v2765 = vsub.s32 0, %v2764
    %v2766 = vrot.slane %v2761, %v2765
    %v2767 = vlaneseq
    %v2768 = vshrl.u32 %v2767, 7
    %v2769 = vsub.s32 1, %v2768
    %v2770 = vrot.slane %v2761, %v2769
    %v2771 = vlaneseq
    %v2772 = vshrl.u32 %v2771, 7
    %v2773 = vsub.s32 2, %v2772
    %v2774 = vrot.slane %v2761, %v2773
    %v2775 = vlaneseq
    %v2776 = vshrl.u32 %v2775, 7
    %v2777 = vsub.s32 3, %v2776
    %v2778 = vrot.slane %v2761, %v2777
    %v2779 = vlaneseq
    %v2780 = vshrl.u32 %v2779, 7
    %v2781 = vsub.s32 4, %v2780
    %v2782 = vrot.slane %v2761, %v2781
    %v2783 = vlaneseq
    %v2784 = vshrl.u32 %v2783, 7
    %v2785 = vsub.s32 5, %v2784
    %v2786 = vrot.slane %v2761, %v2785
    %v2787 = vlaneseq
    %v2788 = vshrl.u32 %v2787, 7
    %v2789 = vsub.s32 6, %v2788
    %v2790 = vrot.slane %v2761, %v2789
    %v2926 = vunpack.c.l.b16 %v2633
    %v2927 = vunpack.c.h.b16 %v2633
    %v2928 = vunpack.c.l.b16 %v2634
    %v2929 = vunpack.c.h.b16 %v2634
    %v2930 = vunpack.c.l.b16 %v2635
    %v2931 = vunpack.c.h.b16 %v2635
    %v2932 = vunpack.c.l.b16 %v2636
    %v2933 = vunpack.c.l.b16 %v2637
    %v2934 = vunpack.c.h.b16 %v2637
    %v2935 = vunpack.c.l.b16 %v2638
    %v2936 = vunpack.c.h.b16 %v2638
    %v2937 = vunpack.c.l.b16 %v2639
    %v2938 = vunpack.c.h.b16 %v2639
    %v2939 = vunpack.c.l.b16 %v2640
    %v2940 = vunpack.c.l.b16 %v2641
    %v2941 = vunpack.c.h.b16 %v2641
    %v2942 = vunpack.c.l.b16 %v2642
    %v2943 = vunpack.c.h.b16 %v2642
    %v2944 = vunpack.c.l.b16 %v2643
    %v2945 = vunpack.c.h.b16 %v2643
    %v2946 = vunpack.c.l.b16 %v2644
    %v2947 = vunpack.c.l.b16 %v2645
    %v2948 = vunpack.c.h.b16 %v2645
    %v2949 = vunpack.c.l.b16 %v2646
    %v2950 = vunpack.c.h.b16 %v2646
    %v2951 = vunpack.c.l.b16 %v2647
    %v2952 = vunpack.c.h.b16 %v2647
    %v2953 = vunpack.c.l.b16 %v2648
    %v2954 = vunpack.c.l.b16 %v2649
    %v2955 = vunpack.c.h.b16 %v2649
    %v2956 = vunpack.c.l.b16 %v2650
    %v2957 = vunpack.c.h.b16 %v2650
    %v2958 = vunpack.c.l.b16 %v2651
    %v2959 = vunpack.c.h.b16 %v2651
    %v2960 = vunpack.c.l.b16 %v2652
    %v2961 = vunpack.c.l.b16 %v2653
    %v2962 = vunpack.c.h.b16 %v2653
    %v2963 = vunpack.c.l.b16 %v2654
    %v2964 = vunpack.c.h.b16 %v2654
    %v2965 = vunpack.c.l.b16 %v2655
    %v2966 = vunpack.c.h.b16 %v2655
    %v2967 = vunpack.c.l.b16 %v2656
    %v2968 = vunpack.c.l.b16 %v2657
    %v2969 = vunpack.c.h.b16 %v2657
    %v2970 = vunpack.c.l.b16 %v2658
    %v2971 = vunpack.c.h.b16 %v2658
    %v2972 = vunpack.c.l.b16 %v2659
    %v2973 = vunpack.c.h.b16 %v2659
    %v2974 = vunpack.c.l.b16 %v2660
    %v2975 = vunpack.c.l.b16 %v2661
    %v2976 = vunpack.c.h.b16 %v2661
    %v2977 = vunpack.c.l.b16 %v2662
    %v2978 = vunpack.c.h.b16 %v2662
    %v2979 = vunpack.c.l.b16 %v2663
    %v2980 = vunpack.c.h.b16 %v2663
    %v2981 = vunpack.c.l.b16 %v2664
    %v2982 = vunpack.c.l.b16 %v2665
    %v2983 = vunpack.c.h.b16 %v2665
    %v2984 = vunpack.c.l.b16 %v2666
    %v2985 = vunpack.c.h.b16 %v2666
    %v2986 = vunpack.c.l.b16 %v2667
    %v2987 = vunpack.c.h.b16 %v2667
    %v2988 = vunpack.c.l.b16 %v2668
    %v2989 = vunpack.c.l.b16 %v2669
    %v2990 = vunpack.c.h.b16 %v2669
    %v2991 = vunpack.c.l.b16 %v2670
    %v2992 = vunpack.c.h.b16 %v2670
    %v2993 = vunpack.c.l.b16 %v2671
    %v2994 = vunpack.c.h.b16 %v2671
    %v2995 = vunpack.c.l.b16 %v2672
    %v2996 = vunpack.c.l.b16 %v2673
    %v2997 = vunpack.c.h.b16 %v2673
    %v2998 = vunpack.c.l.b16 %v2674
    %v2999 = vunpack.c.h.b16 %v2674
    %v3000 = vunpack.c.l.b16 %v2675
    %v3001 = vunpack.c.h.b16 %v2675
    %v3002 = vunpack.c.l.b16 %v2676
    %v3003 = vunpack.c.l.b16 %v2677
    %v3004 = vunpack.c.h.b16 %v2677
    %v3005 = vunpack.c.l.b16 %v2678
    %v3006 = vunpack.c.h.b16 %v2678
    %v3007 = vunpack.c.l.b16 %v2679
    %v3008 = vunpack.c.h.b16 %v2679
    %v3009 = vunpack.c.l.b16 %v2680
    %v3010 = vunpack.c.l.b16 %v2681
    %v3011 = vunpack.c.h.b16 %v2681
    %v3012 = vunpack.c.l.b16 %v2682
    %v3013 = vunpack.c.h.b16 %v2682
    %v3014 = vunpack.c.l.b16 %v2683
    %v3015 = vunpack.c.h.b16 %v2683
    %v3016 = vunpack.c.l.b16 %v2684
    %v3017 = vunpack.c.l.b16 %v2685
    %v3018 = vunpack.c.h.b16 %v2685
    %v3019 = vunpack.c.l.b16 %v2686
    %v3020 = vunpack.c.h.b16 %v2686
    %v3021 = vunpack.c.l.b16 %v2687
    %v3022 = vunpack.c.h.b16 %v2687
    %v3023 = vunpack.c.l.b16 %v2688
    %v3024 = vunpack.c.l.b16 %v2689
    %v3025 = vunpack.c.h.b16 %v2689
    %v3026 = vunpack.c.l.b16 %v2690
    %v3027 = vunpack.c.h.b16 %v2690
    %v3028 = vunpack.c.l.b16 %v2691
    %v3029 = vunpack.c.h.b16 %v2691
    %v3030 = vunpack.c.l.b16 %v2692
    %v3031 = vunpack.c.l.b16 %v2693
    %v3032 = vunpack.c.h.b16 %v2693
    %v3033 = vunpack.c.l.b16 %v2694
    %v3034 = vunpack.c.h.b16 %v2694
    %v3035 = vunpack.c.l.b16 %v2695
    %v3036 = vunpack.c.h.b16 %v2695
    %v3037 = vunpack.c.l.b16 %v2696
    %v3038 = vunpack.c.l.b16 %v2697
    %v3039 = vunpack.c.h.b16 %v2697
    %v3040 = vunpack.c.l.b16 %v2698
    %v3041 = vunpack.c.h.b16 %v2698
    %v3042 = vunpack.c.l.b16 %v2699
    %v3043 = vunpack.c.h.b16 %v2699
    %v3044 = vunpack.c.l.b16 %v2700
    %v3045 = vunpack.c.l.b16 %v2701
    %v3046 = vunpack.c.h.b16 %v2701
    %v3047 = vunpack.c.l.b16 %v2702
    %v3048 = vunpack.c.h.b16 %v2702
    %v3049 = vunpack.c.l.b16 %v2703
    %v3050 = vunpack.c.h.b16 %v2703
    %v3051 = vunpack.c.l.b16 %v2704
    %v3052 = vunpack.c.l.b16 %v2705
    %v3053 = vunpack.c.h.b16 %v2705
    %v3054 = vunpack.c.l.b16 %v2706
    %v3055 = vunpack.c.h.b16 %v2706
    %v3056 = vunpack.c.l.b16 %v2707
    %v3057 = vunpack.c.h.b16 %v2707
    %v3058 = vunpack.c.l.b16 %v2708
    %v3059 = vunpack.c.l.b16 %v2709
    %v3060 = vunpack.c.h.b16 %v2709
    %v3061 = vunpack.c.l.b16 %v2710
    %v3062 = vunpack.c.h.b16 %v2710
    %v3063 = vunpack.c.l.b16 %v2711
    %v3064 = vunpack.c.h.b16 %v2711
    %v3065 = vunpack.c.l.b16 %v2712
    %v3066 = vunpack.c.l.b16 %v2713
    %v3067 = vunpack.c.h.b16 %v2713
    %v3068 = vunpack.c.l.b16 %v2714
    %v3069 = vunpack.c.h.b16 %v2714
    %v3070 = vunpack.c.l.b16 %v2715
    %v3071 = vunpack.c.h.b16 %v2715
    %v3072 = vunpack.c.l.b16 %v2716
    %v3073 = vunpack.c.l.b16 %v2717
    %v3074 = vunpack.c.h.b16 %v2717
    %v3075 = vunpack.c.l.b16 %v2718
    %v3076 = vunpack.c.h.b16 %v2718
    %v3077 = vunpack.c.l.b16 %v2719
    %v3078 = vunpack.c.h.b16 %v2719
    %v3079 = vunpack.c.l.b16 %v2720
    %v3080 = vunpack.c.l.b16 %v2721
    %v3081 = vunpack.c.h.b16 %v2721
    %v3082 = vunpack.c.l.b16 %v2722
    %v3083 = vunpack.c.h.b16 %v2722
    %v3084 = vunpack.c.l.b16 %v2723
    %v3085 = vunpack.c.h.b16 %v2723
    %v3086 = vunpack.c.l.b16 %v2724
    %v3087 = vunpack.c.l.b16 %v2725
    %v3088 = vunpack.c.h.b16 %v2725
    %v3089 = vunpack.c.l.b16 %v2726
    %v3090 = vunpack.c.h.b16 %v2726
    %v3091 = vunpack.c.l.b16 %v2727
    %v3092 = vunpack.c.h.b16 %v2727
    %v3093 = vunpack.c.l.b16 %v2728
    %v3094 = vunpack.c.l.b16 %v2729
    %v3095 = vunpack.c.h.b16 %v2729
    %v3096 = vunpack.c.l.b16 %v2730
    %v3097 = vunpack.c.h.b16 %v2730
    %v3098 = vunpack.c.l.b16 %v2731
    %v3099 = vunpack.c.h.b16 %v2731
    %v3100 = vunpack.c.l.b16 %v2732
    %v3101 = vunpack.c.l.b16 %v2733
    %v3102 = vunpack.c.h.b16 %v2733
    %v3103 = vunpack.c.l.b16 %v2734
    %v3104 = vunpack.c.h.b16 %v2734
    %v3105 = vunpack.c.l.b16 %v2735
    %v3106 = vunpack.c.h.b16 %v2735
    %v3107 = vunpack.c.l.b16 %v2736
    %v3108 = vunpack.c.l.b16 %v2737
    %v3109 = vunpack.c.h.b16 %v2737
    %v3110 = vunpack.c.l.b16 %v2738
    %v3111 = vunpack.c.h.b16 %v2738
    %v3112 = vunpack.c.l.b16 %v2739
    %v3113 = vunpack.c.h.b16 %v2739
    %v3114 = vunpack.c.l.b16 %v2740
    %v3115 = vunpack.c.l.b16 %v2741
    %v3116 = vunpack.c.h.b16 %v2741
    %v3117 = vunpack.c.l.b16 %v2742
    %v3118 = vunpack.c.h.b16 %v2742
    %v3119 = vunpack.c.l.b16 %v2743
    %v3120 = vunpack.c.h.b16 %v2743
    %v3121 = vunpack.c.l.b16 %v2744
    %v3122 = vunpack.c.l.b16 %v2745
    %v3123 = vunpack.c.h.b16 %v2745
    %v3124 = vunpack.c.l.b16 %v2746
    %v3125 = vunpack.c.h.b16 %v2746
    %v3126 = vunpack.c.l.b16 %v2747
    %v3127 = vunpack.c.h.b16 %v2747
    %v3128 = vunpack.c.l.b16 %v2748
    %v3129 = vunpack.c.l.b16 %v2749
    %v3130 = vunpack.c.h.b16 %v2749
    %v3131 = vunpack.c.l.b16 %v2750
    %v3132 = vunpack.c.h.b16 %v2750
    %v3133 = vunpack.c.l.b16 %v2751
    %v3134 = vunpack.c.h.b16 %v2751
    %v3135 = vunpack.c.l.b16 %v2752
    %v3136 = vunpack.c.l.b16 %v2753
    %v3137 = vunpack.c.h.b16 %v2753
    %v3138 = vunpack.c.l.b16 %v2754
    %v3139 = vunpack.c.h.b16 %v2754
    %v3140 = vunpack.c.l.b16 %v2755
    %v3141 = vunpack.c.h.b16 %v2755
    %v3142 = vunpack.c.l.b16 %v2756
    %v3143 = vunpack.c.l.b16 %v2757
    %v3144 = vunpack.c.h.b16 %v2757
    %v3145 = vunpack.c.l.b16 %v2758
    %v3146 = vunpack.c.h.b16 %v2758
    %v3147 = vunpack.c.l.b16 %v2759
    %v3148 = vunpack.c.h.b16 %v2759
    %v3149 = vunpack.c.l.b16 %v2760
    %v3150 = vpack.c.b16 %v2933, %v2926
    %v3151 = vpack.c.b16 %v2934, %v2927
    %v3152 = vpack.c.b16 %v2935, %v2928
    %v3153 = vpack.c.b16 %v2936, %v2929
    %v3154 = vpack.c.b16 %v2937, %v2930
    %v3155 = vpack.c.b16 %v2938, %v2931
    %v3156 = vpack.c.b16 %v2939, %v2932
    %v3157 = vpack.c.b16 %v2947, %v2940
    %v3158 = vpack.c.b16 %v2948, %v2941
    %v3159 = vpack.c.b16 %v2949, %v2942
    %v3160 = vpack.c.b16 %v2950, %v2943
    %v3161 = vpack.c.b16 %v2951, %v2944
    %v3162 = vpack.c.b16 %v2952, %v2945
    %v3163 = vpack.c.b16 %v2953, %v2946
    %v3164 = vpack.c.b16 %v2961, %v2954
    %v3165 = vpack.c.b16 %v2962, %v2955
    %v3166 = vpack.c.b16 %v2963, %v2956
    %v3167 = vpack.c.b16 %v2964, %v2957
    %v3168 = vpack.c.b16 %v2965, %v2958
    %v3169 = vpack.c.b16 %v2966, %v2959
    %v3170 = vpack.c.b16 %v2967, %v2960
    %v3171 = vpack.c.b16 %v2975, %v2968
    %v3172 = vpack.c.b16 %v2976, %v2969
    %v3173 = vpack.c.b16 %v2977, %v2970
    %v3174 = vpack.c.b16 %v2978, %v2971
    %v3175 = vpack.c.b16 %v2979, %v2972
    %v3176 = vpack.c.b16 %v2980, %v2973
    %v3177 = vpack.c.b16 %v2981, %v2974
    %v3178 = vpack.c.b16 %v2989, %v2982
    %v3179 = vpack.c.b16 %v2990, %v2983
    %v3180 = vpack.c.b16 %v2991, %v2984
    %v3181 = vpack.c.b16 %v2992, %v2985
    %v3182 = vpack.c.b16 %v2993, %v2986
    %v3183 = vpack.c.b16 %v2994, %v2987
    %v3184 = vpack.c.b16 %v2995, %v2988
    %v3185 = vpack.c.b16 %v3003, %v2996
    %v3186 = vpack.c.b16 %v3004, %v2997
    %v3187 = vpack.c.b16 %v3005, %v2998
    %v3188 = vpack.c.b16 %v3006, %v2999
    %v3189 = vpack.c.b16 %v3007, %v3000
    %v3190 = vpack.c.b16 %v3008, %v3001
    %v3191 = vpack.c.b16 %v3009, %v3002
    %v3192 = vpack.c.b16 %v3017, %v3010
    %v3193 = vpack.c.b16 %v3018, %v3011
    %v3194 = vpack.c.b16 %v3019, %v3012
    %v3195 = vpack.c.b16 %v3020, %v3013
    %v3196 = vpack.c.b16 %v3021, %v3014
    %v3197 = vpack.c.b16 %v3022, %v3015
    %v3198 = vpack.c.b16 %v3023, %v3016
    %v3199 = vpack.c.b16 %v3031, %v3024
    %v3200 = vpack.c.b16 %v3032, %v3025
    %v3201 = vpack.c.b16 %v3033, %v3026
    %v3202 = vpack.c.b16 %v3034, %v3027
    %v3203 = vpack.c.b16 %v3035, %v3028
    %v3204 = vpack.c.b16 %v3036, %v3029
    %v3205 = vpack.c.b16 %v3037, %v3030
    %v3206 = vpack.c.b16 %v3045, %v3038
    %v3207 = vpack.c.b16 %v3046, %v3039
    %v3208 = vpack.c.b16 %v3047, %v3040
    %v3209 = vpack.c.b16 %v3048, %v3041
    %v3210 = vpack.c.b16 %v3049, %v3042
    %v3211 = vpack.c.b16 %v3050, %v3043
    %v3212 = vpack.c.b16 %v3051, %v3044
    %v3213 = vpack.c.b16 %v3059, %v3052
    %v3214 = vpack.c.b16 %v3060, %v3053
    %v3215 = vpack.c.b16 %v3061, %v3054
    %v3216 = vpack.c.b16 %v3062, %v3055
    %v3217 = vpack.c.b16 %v3063, %v3056
    %v3218 = vpack.c.b16 %v3064, %v3057
    %v3219 = vpack.c.b16 %v3065, %v3058
    %v3220 = vpack.c.b16 %v3073, %v3066
    %v3221 = vpack.c.b16 %v3074, %v3067
    %v3222 = vpack.c.b16 %v3075, %v3068
    %v3223 = vpack.c.b16 %v3076, %v3069
    %v3224 = vpack.c.b16 %v3077, %v3070
    %v3225 = vpack.c.b16 %v3078, %v3071
    %v3226 = vpack.c.b16 %v3079, %v3072
    %v3227 = vpack.c.b16 %v3087, %v3080
    %v3228 = vpack.c.b16 %v3088, %v3081
    %v3229 = vpack.c.b16 %v3089, %v3082
    %v3230 = vpack.c.b16 %v3090, %v3083
    %v3231 = vpack.c.b16 %v3091, %v3084
    %v3232 = vpack.c.b16 %v3092, %v3085
    %v3233 = vpack.c.b16 %v3093, %v3086
    %v3234 = vpack.c.b16 %v3101, %v3094
    %v3235 = vpack.c.b16 %v3102, %v3095
    %v3236 = vpack.c.b16 %v3103, %v3096
    %v3237 = vpack.c.b16 %v3104, %v3097
    %v3238 = vpack.c.b16 %v3105, %v3098
    %v3239 = vpack.c.b16 %v3106, %v3099
    %v3240 = vpack.c.b16 %v3107, %v3100
    %v3241 = vpack.c.b16 %v3115, %v3108
    %v3242 = vpack.c.b16 %v3116, %v3109
    %v3243 = vpack.c.b16 %v3117, %v3110
    %v3244 = vpack.c.b16 %v3118, %v3111
    %v3245 = vpack.c.b16 %v3119, %v3112
    %v3246 = vpack.c.b16 %v3120, %v3113
    %v3247 = vpack.c.b16 %v3121, %v3114
    %v3248 = vpack.c.b16 %v3129, %v3122
    %v3249 = vpack.c.b16 %v3130, %v3123
    %v3250 = vpack.c.b16 %v3131, %v3124
    %v3251 = vpack.c.b16 %v3132, %v3125
    %v3252 = vpack.c.b16 %v3133, %v3126
    %v3253 = vpack.c.b16 %v3134, %v3127
    %v3254 = vpack.c.b16 %v3135, %v3128
    %v3255 = vpack.c.b16 %v3143, %v3136
    %v3256 = vpack.c.b16 %v3144, %v3137
    %v3257 = vpack.c.b16 %v3145, %v3138
    %v3258 = vpack.c.b16 %v3146, %v3139
    %v3259 = vpack.c.b16 %v3147, %v3140
    %v3260 = vpack.c.b16 %v3148, %v3141
    %v3261 = vpack.c.b16 %v3149, %v3142
    %3374 = vmatprep.subr.bf16.mxu0 %v3151
    %3375 = vmatpush1.bf16.msra.mxu0 %v3150
    %3376 = vmatprep.subr.bf16.mxu0 %v3158
    %3377 = vmatpush1.bf16.msra.mxu0 %v3157
    %3378 = vmatprep.subr.bf16.mxu0 %v3165
    %3379 = vmatpush1.bf16.msra.mxu0 %v3164
    %3380 = vmatprep.subr.bf16.mxu0 %v3172
    %3381 = vmatpush1.bf16.msra.mxu0 %v3171
    %3382 = vmatprep.subr.bf16.mxu0 %v3179
    %3383 = vmatpush1.bf16.msra.mxu0 %v3178
    %3384 = vmatprep.subr.bf16.mxu0 %v3186
    %3385 = vmatpush1.bf16.msra.mxu0 %v3185
    %3386 = vmatprep.subr.bf16.mxu0 %v3193
    %3387 = vmatpush1.bf16.msra.mxu0 %v3192
    %3388 = vmatprep.subr.bf16.mxu0 %v3200
    %3389 = vmatpush1.bf16.msra.mxu0 %v3199
    %3390 = vmatprep.subr.bf16.mxu0 %v3207
    %3391 = vmatpush1.bf16.msra.mxu0 %v3206
    %3392 = vmatprep.subr.bf16.mxu0 %v3214
    %3393 = vmatpush1.bf16.msra.mxu0 %v3213
    %3394 = vmatprep.subr.bf16.mxu0 %v3221
    %3395 = vmatpush1.bf16.msra.mxu0 %v3220
    %3396 = vmatprep.subr.bf16.mxu0 %v3228
    %3397 = vmatpush1.bf16.msra.mxu0 %v3227
    %3398 = vmatprep.subr.bf16.mxu0 %v3235
    %3399 = vmatpush1.bf16.msra.mxu0 %v3234
    %3400 = vmatprep.subr.bf16.mxu0 %v3242
    %3401 = vmatpush1.bf16.msra.mxu0 %v3241
    %3402 = vmatprep.subr.bf16.mxu0 %v3249
    %3403 = vmatpush1.bf16.msra.mxu0 %v3248
    %3404 = vmatprep.subr.bf16.mxu0 %v3256
    %3405 = vmatpush1.bf16.msra.mxu0 %v3255
    %3406 = vmatprep.mubr.bf16.mxu0 %v2632
    %3407 = vmatmul.mubr.bf16.gmra.mrb[0].mxu0 %v2631
    %v3408 = vpop.f32.mrb[0].mxu0
    %v3409 = vadd.f32 %v2766, %v3408
    %v3410 = vpop.f32.mrb[0].mxu0
    %v3411 = vadd.f32 %v2770, %v3410
    %v3412 = vpop.f32.mrb[0].mxu0
    %v3413 = vadd.f32 %v2766, %v3412
    %v3414 = vpop.f32.mrb[0].mxu0
    %v3415 = vadd.f32 %v2770, %v3414
    %3416 = vdwg.mxu0
    %3417 = vmatprep.subr.bf16.mxu0 %v3153
    %3418 = vmatpush1.bf16.msra.mxu0 %v3152
    %3419 = vmatprep.subr.bf16.mxu0 %v3160
    %3420 = vmatpush1.bf16.msra.mxu0 %v3159
    %3421 = vmatprep.subr.bf16.mxu0 %v3167
    %3422 = vmatpush1.bf16.msra.mxu0 %v3166
    %3423 = vmatprep.subr.bf16.mxu0 %v3174
    %3424 = vmatpush1.bf16.msra.mxu0 %v3173
    %3425 = vmatprep.subr.bf16.mxu0 %v3181
    %3426 = vmatpush1.bf16.msra.mxu0 %v3180
    %3427 = vmatprep.subr.bf16.mxu0 %v3188
    %3428 = vmatpush1.bf16.msra.mxu0 %v3187
    %3429 = vmatprep.subr.bf16.mxu0 %v3195
    %3430 = vmatpush1.bf16.msra.mxu0 %v3194
    %3431 = vmatprep.subr.bf16.mxu0 %v3202
    %3432 = vmatpush1.bf16.msra.mxu0 %v3201
    %3433 = vmatprep.subr.bf16.mxu0 %v3209
    %3434 = vmatpush1.bf16.msra.mxu0 %v3208
    %3435 = vmatprep.subr.bf16.mxu0 %v3216
    %3436 = vmatpush1.bf16.msra.mxu0 %v3215
    %3437 = vmatprep.subr.bf16.mxu0 %v3223
    %3438 = vmatpush1.bf16.msra.mxu0 %v3222
    %3439 = vmatprep.subr.bf16.mxu0 %v3230
    %3440 = vmatpush1.bf16.msra.mxu0 %v3229
    %3441 = vmatprep.subr.bf16.mxu0 %v3237
    %3442 = vmatpush1.bf16.msra.mxu0 %v3236
    %3443 = vmatprep.subr.bf16.mxu0 %v3244
    %3444 = vmatpush1.bf16.msra.mxu0 %v3243
    %3445 = vmatprep.subr.bf16.mxu0 %v3251
    %3446 = vmatpush1.bf16.msra.mxu0 %v3250
    %3447 = vmatprep.subr.bf16.mxu0 %v3258
    %3448 = vmatpush1.bf16.msra.mxu0 %v3257
    %3449 = vmatprep.mubr.bf16.mxu0 %v2632
    %3450 = vmatmul.mubr.bf16.gmra.mrb[0].mxu0 %v2631
    %v3451 = vpop.f32.mrb[0].mxu0
    %v3452 = vadd.f32 %v2774, %v3451
    %v3453 = vpop.f32.mrb[0].mxu0
    %v3454 = vadd.f32 %v2778, %v3453
    %v3455 = vpop.f32.mrb[0].mxu0
    %v3456 = vadd.f32 %v2774, %v3455
    %v3457 = vpop.f32.mrb[0].mxu0
    %v3458 = vadd.f32 %v2778, %v3457
    %3459 = vdwg.mxu0
    %3460 = vmatprep.subr.bf16.mxu0 %v3155
    %3461 = vmatpush1.bf16.msra.mxu0 %v3154
    %3462 = vmatprep.subr.bf16.mxu0 %v3162
    %3463 = vmatpush1.bf16.msra.mxu0 %v3161
    %3464 = vmatprep.subr.bf16.mxu0 %v3169
    %3465 = vmatpush1.bf16.msra.mxu0 %v3168
    %3466 = vmatprep.subr.bf16.mxu0 %v3176
    %3467 = vmatpush1.bf16.msra.mxu0 %v3175
    %3468 = vmatprep.subr.bf16.mxu0 %v3183
    %3469 = vmatpush1.bf16.msra.mxu0 %v3182
    %3470 = vmatprep.subr.bf16.mxu0 %v3190
    %3471 = vmatpush1.bf16.msra.mxu0 %v3189
    %3472 = vmatprep.subr.bf16.mxu0 %v3197
    %3473 = vmatpush1.bf16.msra.mxu0 %v3196
    %3474 = vmatprep.subr.bf16.mxu0 %v3204
    %3475 = vmatpush1.bf16.msra.mxu0 %v3203
    %3476 = vmatprep.subr.bf16.mxu0 %v3211
    %3477 = vmatpush1.bf16.msra.mxu0 %v3210
    %3478 = vmatprep.subr.bf16.mxu0 %v3218
    %3479 = vmatpush1.bf16.msra.mxu0 %v3217
    %3480 = vmatprep.subr.bf16.mxu0 %v3225
    %3481 = vmatpush1.bf16.msra.mxu0 %v3224
    %3482 = vmatprep.subr.bf16.mxu0 %v3232
    %3483 = vmatpush1.bf16.msra.mxu0 %v3231
    %3484 = vmatprep.subr.bf16.mxu0 %v3239
    %3485 = vmatpush1.bf16.msra.mxu0 %v3238
    %3486 = vmatprep.subr.bf16.mxu0 %v3246
    %3487 = vmatpush1.bf16.msra.mxu0 %v3245
    %3488 = vmatprep.subr.bf16.mxu0 %v3253
    %3489 = vmatpush1.bf16.msra.mxu0 %v3252
    %3490 = vmatprep.subr.bf16.mxu0 %v3260
    %3491 = vmatpush1.bf16.msra.mxu0 %v3259
    %3492 = vmatprep.mubr.bf16.mxu0 %v2632
    %3493 = vmatmul.mubr.bf16.gmra.mrb[0].mxu0 %v2631
    %v3494 = vpop.f32.mrb[0].mxu0
    %v3495 = vadd.f32 %v2782, %v3494
    %v3496 = vpop.f32.mrb[0].mxu0
    %v3497 = vadd.f32 %v2786, %v3496
    %v3498 = vpop.f32.mrb[0].mxu0
    %v3499 = vadd.f32 %v2782, %v3498
    %v3500 = vpop.f32.mrb[0].mxu0
    %v3501 = vadd.f32 %v2786, %v3500
    %3502 = vdwg.mxu0
    %3503 = vmatprep.subr.bf16.mxu0 0
    %3504 = vmatpush1.bf16.msra.mxu0 %v3156
    %3505 = vmatprep.subr.bf16.mxu0 0
    %3506 = vmatpush1.bf16.msra.mxu0 %v3163
    %3507 = vmatprep.subr.bf16.mxu0 0
    %3508 = vmatpush1.bf16.msra.mxu0 %v3170
    %3509 = vmatprep.subr.bf16.mxu0 0
    %3510 = vmatpush1.bf16.msra.mxu0 %v3177
    %3511 = vmatprep.subr.bf16.mxu0 0
    %3512 = vmatpush1.bf16.msra.mxu0 %v3184
    %3513 = vmatprep.subr.bf16.mxu0 0
    %3514 = vmatpush1.bf16.msra.mxu0 %v3191
    %3515 = vmatprep.subr.bf16.mxu0 0
    %3516 = vmatpush1.bf16.msra.mxu0 %v3198
    %3517 = vmatprep.subr.bf16.mxu0 0
    %3518 = vmatpush1.bf16.msra.mxu0 %v3205
    %3519 = vmatprep.subr.bf16.mxu0 0
    %3520 = vmatpush1.bf16.msra.mxu0 %v3212
    %3521 = vmatprep.subr.bf16.mxu0 0
    %3522 = vmatpush1.bf16.msra.mxu0 %v3219
    %3523 = vmatprep.subr.bf16.mxu0 0
    %3524 = vmatpush1.bf16.msra.mxu0 %v3226
    %3525 = vmatprep.subr.bf16.mxu0 0
    %3526 = vmatpush1.bf16.msra.mxu0 %v3233
    %3527 = vmatprep.subr.bf16.mxu0 0
    %3528 = vmatpush1.bf16.msra.mxu0 %v3240
    %3529 = vmatprep.subr.bf16.mxu0 0
    %3530 = vmatpush1.bf16.msra.mxu0 %v3247
    %3531 = vmatprep.subr.bf16.mxu0 0
    %3532 = vmatpush1.bf16.msra.mxu0 %v3254
    %3533 = vmatprep.subr.bf16.mxu0 0
    %3534 = vmatpush1.bf16.msra.mxu0 %v3261
    %3535 = vmatprep.mubr.bf16.mxu0 %v2632
    %3536 = vmatmul.mubr.bf16.gmra.mrb[0].mxu0 %v2631
    %v3537 = vpop.f32.mrb[0].mxu0
    %v3538 = vadd.f32 %v2790, %v3537
    %v3539 = vpop.f32.mrb[0].mxu0
    %v3540 = vpop.f32.mrb[0].mxu0
    %v3541 = vadd.f32 %v2790, %v3540
    %v3542 = vpop.f32.mrb[0].mxu0
    %3543 = vdwg.mxu0
    %v3544 = vtanh.pop %v3409
    %v3545 = vtanh.pop %v3411
    %v3546 = vtanh.pop %v3452
    %v3547 = vtanh.pop %v3454
    %v3548 = vtanh.pop %v3495
    %v3549 = vtanh.pop %v3497
    %v3550 = vtanh.pop %v3538
    %v3551 = vtanh.pop %v3413
    %v3552 = vtanh.pop %v3415
    %v3553 = vtanh.pop %v3456
    %v3554 = vtanh.pop %v3458
    %v3555 = vtanh.pop %v3499
    %v3556 = vtanh.pop %v3501
    %v3557 = vtanh.pop %v3541
    %v3558 = vpack.c.bf16 %v3551, %v3544
    %v3559 = vpack.c.bf16 %v3552, %v3545
    %v3560 = vpack.c.bf16 %v3553, %v3546
    %v3561 = vpack.c.bf16 %v3554, %v3547
    %v3562 = vpack.c.bf16 %v3555, %v3548
    %v3563 = vpack.c.bf16 %v3556, %v3549
    %v3564 = vpack.c.bf16 %v3557, %v3550
    %v3572 = vunpack.c.l.b16 %v3558
    %v3573 = vunpack.c.l.b16 %v3559
    %v3574 = vunpack.c.l.b16 %v3560
    %v3575 = vunpack.c.l.b16 %v3561
    %v3576 = vunpack.c.l.b16 %v3562
    %v3577 = vunpack.c.l.b16 %v3563
    %v3578 = vunpack.c.l.b16 %v3564
    %v3579 = vunpack.c.h.b16 %v3558
    %v3580 = vunpack.c.h.b16 %v3559
    %v3581 = vunpack.c.h.b16 %v3560
    %v3582 = vunpack.c.h.b16 %v3561
    %v3583 = vunpack.c.h.b16 %v3562
    %v3584 = vunpack.c.h.b16 %v3563
    %v3585 = vunpack.c.h.b16 %v3564
    %v3586 = vpack.c.b16 %v3573, %v3572
    %v3587 = vpack.c.b16 %v3575, %v3574
    %v3588 = vpack.c.b16 %v3577, %v3576
    %v3589 = vpack.c.b16 %v3578, %v3578
    %v3590 = vpack.c.b16 %v3580, %v3579
    %v3591 = vpack.c.b16 %v3582, %v3581
    %v3592 = vpack.c.b16 %v3584, %v3583
    %v3593 = vpack.c.b16 %v3585, %v3585
    %3602 = vst [vmem:[%s11] sm:$0xff] %v3586
    %3603 = vst [vmem:[%s11 + $0x8] sm:$0xff] %v3587
    %3604 = vst [vmem:[%s11 + $0x10] sm:$0xff] %v3588
    %3605 = vst [vmem:[%s11 + $0x18] sm:$0xf] %v3589
    %3606 = vst [vmem:[%s11 + $0x1c] sm:$0xff] %v3590
    %3607 = vst [vmem:[%s11 + $0x24] sm:$0xff] %v3591
    %3608 = vst [vmem:[%s11 + $0x2c] sm:$0xff] %v3592
    %3609 = vst [vmem:[%s11 + $0x34] sm:$0xf] %v3593
    // Predicated region
    $region66: #{generator_forward.1} parent=1 // pred_check
      _
    $region67: #{generator_forward.1} parent=1 // pred_check_branch
      %3611 = sbr.rel (0) target = $region69
    $region68: #{generator_forward.1} parent=1 // pred_region
      _
    $region69: #{generator_forward.1} parent=1 // pred_fallthru
      _
    // Predicated region
    $region70: #{generator_forward.1} parent=1 // pred_check
      _
    $region71: #{generator_forward.1} parent=1 // pred_check_branch
      %3613 = sbr.rel (0) target = $region73
    $region72: #{generator_forward.1} parent=1 // pred_region
      _
    $region73: #{generator_forward.1} parent=1 // pred_fallthru
      _
    %3614 = vsyncpa [#allocation3], 1
    %3615 = vsyncpa [#allocation5], 1
    %3616 = vsyncpa [#allocation8], 1

</llo_original>
